<compile_context>
chip_gen: v6e
topology: v6e:2x2x1
jax: 0.10.0
libtpu: 0.0.40
codegen_flags: <defaults>
</compile_context>

<pallas_src>
import functools

import jax
import jax.numpy as jnp
from jax import lax
from jax.experimental import pallas as pl
from jax.experimental.pallas import tpu as pltpu


def _round_up(x, m):
    return ((x + m - 1) // m) * m


def _vmem_capacity_bytes():
    try:
        return int(pltpu.get_tpu_info().vmem_capacity_bytes)
    except Exception:
        return 64 * 1024 * 1024  # conservative: v7x per-TC VMEM


def simclr_kernel(x_ref, wbb_ref, bbb_ref, wfused_ref, bfused_ref, w2_ref, b2_ref,
                  logits_ref, proj_ref, feat_acc_ref, *, nc_pad):
    """One (batch-tile i, K-slab k) grid step.

    The backbone matmul is accumulated over the K (in_dim) axis into a f32 VMEM
    scratch; the classifier/simclr heads and the normalize run only on the final
    K slab of each batch tile (outputs are resident across the K axis).
    """
    k = pl.program_id(1)

    @pl.when(k == 0)
    def _():
        feat_acc_ref[...] = jnp.zeros_like(feat_acc_ref)

    # Partial backbone matmul for this K slab.  x arrives f32 (no wrapper-side
    # pad/cast materialization); cast to bf16 just before it hits the MXU.
    feat_acc_ref[...] += jnp.dot(x_ref[...].astype(jnp.bfloat16), wbb_ref[...],
                                 preferred_element_type=jnp.float32)

    @pl.when(k == pl.num_programs(1) - 1)
    def _():
        # ---- backbone bias + ReLU -> feature ----
        feat = jnp.maximum(feat_acc_ref[...] + bbb_ref[...], 0.0)

        # ---- fused [classifier head | simclr_head[0]]: both share `feat` as LHS ----
        fused = jnp.dot(feat.astype(jnp.bfloat16), wfused_ref[...],
                        preferred_element_type=jnp.float32) + bfused_ref[...]
        logits = fused[:, :nc_pad]                 # backbone classifier logits (`_`)
        h = jnp.maximum(fused[:, nc_pad:], 0.0)    # simclr_head Linear -> ReLU

        # ---- simclr_head[2]: Linear(F, out_dim) ----
        z = jnp.dot(h.astype(jnp.bfloat16), w2_ref[...],
                    preferred_element_type=jnp.float32) + b2_ref[...]

        # ---- F.normalize(z, dim=-1), eps=1e-12, via rsqrt on the EUP ----
        # Padded lanes of z are exactly zero, so the sum-of-squares is unchanged.
        sumsq = jnp.sum(z * z, axis=-1, keepdims=True)
        z = z * lax.rsqrt(jnp.maximum(sumsq, 1e-24))

        logits_ref[...] = logits.astype(logits_ref.dtype)
        proj_ref[...] = z.astype(proj_ref.dtype)


def prepare_params(params):
    """Pad/cast weights to lane-dense bf16 blocks ONCE (hoisted out of the forward)."""
    wbb, bbb, wcls, bcls, w1, b1, w2, b2 = params
    in_dim, feature_dim = wbb.shape
    num_classes = wcls.shape[1]
    out_dim = w2.shape[1]

    # K is padded to a multiple of TK (TK itself a multiple of 128, <= 512).
    tk = min(512, _round_up(in_dim, 128))
    k_pad = _round_up(in_dim, tk)
    f_pad = _round_up(feature_dim, 128)
    nc_pad = _round_up(num_classes, 128)
    out_pad = _round_up(out_dim, 128)

    f32, bf16 = jnp.float32, jnp.bfloat16
    wbb_p = jnp.pad(wbb, ((0, k_pad - in_dim), (0, f_pad - feature_dim))).astype(bf16)
    bbb_p = jnp.pad(bbb.reshape(1, -1), ((0, 0), (0, f_pad - feature_dim))).astype(f32)

    wcls_p = jnp.pad(wcls, ((0, f_pad - feature_dim), (0, nc_pad - num_classes)))
    w1_p = jnp.pad(w1, ((0, f_pad - feature_dim), (0, f_pad - feature_dim)))
    wfused = jnp.concatenate([wcls_p, w1_p], axis=1).astype(bf16)
    bcls_p = jnp.pad(bcls.reshape(1, -1), ((0, 0), (0, nc_pad - num_classes)))
    b1_p = jnp.pad(b1.reshape(1, -1), ((0, 0), (0, f_pad - feature_dim)))
    bfused = jnp.concatenate([bcls_p, b1_p], axis=1).astype(f32)

    w2_p = jnp.pad(w2, ((0, f_pad - feature_dim), (0, out_pad - out_dim))).astype(bf16)
    b2_p = jnp.pad(b2.reshape(1, -1), ((0, 0), (0, out_pad - out_dim))).astype(f32)

    return dict(wbb=wbb_p, bbb=bbb_p, wfused=wfused, bfused=bfused, w2=w2_p, b2=b2_p,
                in_dim=in_dim, feature_dim=feature_dim, num_classes=num_classes,
                out_dim=out_dim, tk=tk, k_pad=k_pad, f_pad=f_pad, nc_pad=nc_pad,
                out_pad=out_pad)


def simclr_net_forward(x, prep, *, tm=None):
    """x: [N, C, H, W] float32 (NCHW, like PyTorch). Returns (logits, [proj_normalized])."""
    N = x.shape[0]
    x_flat = x.reshape(N, -1)                 # matches torch .view(N, -1) on NCHW
    in_dim = x_flat.shape[1]
    assert in_dim == prep["in_dim"]

    TK, K_pad = prep["tk"], prep["k_pad"]
    F_pad, NC_pad, OUT_pad = prep["f_pad"], prep["nc_pad"], prep["out_pad"]
    num_classes, out_dim = prep["num_classes"], prep["out_dim"]

    vmem_cap = _vmem_capacity_bytes()
    vmem_limit = min((vmem_cap * 3) // 4, 100 * 1024 * 1024)

    # Adaptive batch tile: tiny batches pad to 16 rows (not 128); large batches on
    # big-VMEM parts (v5e/v6e 128 MiB) get 256-row tiles to better fill the MXU in M
    # and halve per-step pipeline overhead.  v7x megacore benefits from >= 2 tiles.
    if tm is None:
        tm_cap = 256 if (vmem_cap >= 96 * 1024 * 1024 and N >= 512) else 128
        tm = min(tm_cap, _round_up(max(N, 1), 16))
    TM = tm
    N_pad = _round_up(max(N, 1), TM)

    # Only pad x when actually needed; keep it f32 (cast to bf16 happens in-kernel),
    # so the dominant HBM stream is read once at 4 B/elem instead of written+reread.
    if (N_pad, K_pad) != (N, in_dim):
        xp = jnp.pad(x_flat, ((0, N_pad - N), (0, K_pad - in_dim)))
    else:
        xp = x_flat

    grid = (N_pad // TM, K_pad // TK)
    kernel = functools.partial(simclr_kernel, nc_pad=NC_pad)

    def _run(single_buffer_weights):
        def const_spec(shape):
            # Weights/biases whose block index never changes: single-buffer them so
            # they don't cost 2x their size in VMEM.
            if single_buffer_weights:
                return pl.BlockSpec(shape, lambda i, k: (0, 0),
                                    pipeline_mode=pl.Buffered(1))
            return pl.BlockSpec(shape, lambda i, k: (0, 0))

        return pl.pallas_call(
            kernel,
            out_shape=(
                jax.ShapeDtypeStruct((N_pad, NC_pad), jnp.bfloat16),
                jax.ShapeDtypeStruct((N_pad, OUT_pad), jnp.float32),
            ),
            grid=grid,
            in_specs=[
                # x: streamed per (batch, K) step, f32, default double-buffered.
                pl.BlockSpec((TM, TK), lambda i, k: (i, k)),
                # backbone weight: streamed per K slab.
                pl.BlockSpec((TK, F_pad), lambda i, k: (k, 0)),
                # resident (constant-index) blocks:
                const_spec((1, F_pad)),
                const_spec((F_pad, NC_pad + F_pad)),
                const_spec((1, NC_pad + F_pad)),
                const_spec((F_pad, OUT_pad)),
                const_spec((1, OUT_pad)),
            ],
            out_specs=(
                # Outputs are resident across the K axis (index ignores k); written
                # only on the final K slab of each batch tile.
                pl.BlockSpec((TM, NC_pad), lambda i, k: (i, 0)),
                pl.BlockSpec((TM, OUT_pad), lambda i, k: (i, 0)),
            ),
            scratch_shapes=[pltpu.VMEM((TM, F_pad), jnp.float32)],
            compiler_params=pltpu.CompilerParams(
                dimension_semantics=("parallel", "arbitrary"),
                vmem_limit_bytes=vmem_limit,
            ),
        )(xp, prep["wbb"], prep["bbb"], prep["wfused"], prep["bfused"],
          prep["w2"], prep["b2"])

    try:
        logits_p, proj_p = _run(True)
    except Exception:
        # pipeline_mode=pl.Buffered(1) unsupported on this jax build: fall back to
        # default double-buffered resident weights (correct, just ~2x weight VMEM).
        logits_p, proj_p = _run(False)

    # slice off row/lane padding before returning
    logits = logits_p[:N, :num_classes].astype(jnp.float32)
    proj = proj_p[:N, :out_dim]

    # SimClrNet.forward returns (_, [F.normalize(simclr_head(feature), dim=-1)])
    return logits, [proj]


def make_params(key, in_dim, feature_dim, num_classes, out_dim):
    ks = jax.random.split(key, 8)

    def lin(kw, kb, fan_in, fan_out):
        w = jax.random.normal(kw, (fan_in, fan_out), jnp.float32) / jnp.sqrt(
            jnp.float32(fan_in))
        b = jax.random.normal(kb, (1, fan_out), jnp.float32) * 0.01
        return w, b

    wbb, bbb = lin(ks[0], ks[1], in_dim, feature_dim)         # backbone linear
    wcls, bcls = lin(ks[2], ks[3], feature_dim, num_classes)  # backbone classifier
    w1, b1 = lin(ks[4], ks[5], feature_dim, feature_dim)      # simclr_head[0]
    w2, b2 = lin(ks[6], ks[7], feature_dim, out_dim)          # simclr_head[2]
    return (wbb, bbb, wcls, bcls, w1, b1, w2, b2)


def ref_forward(x, params):
    """Pure-JAX f32 reference of the same forward (for a loose numerical check)."""
    N = x.shape[0]
    x_flat = x.reshape(N, -1)
    wbb, bbb, wcls, bcls, w1, b1, w2, b2 = params
    feat = jnp.maximum(x_flat @ wbb + bbb, 0.0)
    logits = feat @ wcls + bcls
    h = jnp.maximum(feat @ w1 + b1, 0.0)
    z = h @ w2 + b2
    norm = jnp.sqrt(jnp.sum(z * z, axis=-1, keepdims=True))
    z = z / jnp.maximum(norm, 1e-12)
    return logits, z


if __name__ == "__main__":
    # small shapes consistent with an NCHW conv-style backbone input
    N, C, H, W = 2, 4, 16, 16
    feature_dim = 64     # backbone.feature_size
    out_dim = 32         # SimClrNet out_dim (default 128; kept small here)
    num_classes = 10

    key = jax.random.PRNGKey(0)
    kx, kp = jax.random.split(key)
    x = jax.random.normal(kx, (N, C, H, W), jnp.float32)
    params = make_params(kp, C * H * W, feature_dim, num_classes, out_dim)

    prep = prepare_params(params)            # weight pad/cast hoisted: done once
    logits, proj_list = simclr_net_forward(x, prep)
    logits = jax.block_until_ready(logits)
    proj = jax.block_until_ready(proj_list[0])

    assert logits.shape == (N, num_classes)
    assert proj.shape == (N, out_dim)

    # sanity: normalized rows have unit L2 norm (normalize is done in f32)
    norms = jnp.sqrt(jnp.sum(proj * proj, axis=-1))
    assert bool(jnp.all(jnp.abs(norms - 1.0) < 1e-3))

    # loose comparison against the f32 reference (bf16 MXU operands + bf16 logits
    # output -> ~1e-2 level; intentional precision trade-off on the classifier head)
    ref_logits, ref_proj = ref_forward(x, params)
    assert bool(jnp.max(jnp.abs(logits - ref_logits)) < 1e-1)
    assert bool(jnp.max(jnp.abs(proj - ref_proj)) < 5e-2)

    print("KERNEL_OK")
</pallas_src>

<mosaic_0001>
module attributes {stable_mosaic.version = 11 : i64} {
  func.func @simclr_kernel(%arg0: i32, %arg1: i32, %arg2: memref<16x512xf32, #tpu.memory_space<vmem>>, %arg3: memref<512x128xbf16, #tpu.memory_space<vmem>>, %arg4: memref<1x128xf32, #tpu.memory_space<vmem>>, %arg5: memref<128x256xbf16, #tpu.memory_space<vmem>>, %arg6: memref<1x256xf32, #tpu.memory_space<vmem>>, %arg7: memref<128x128xbf16, #tpu.memory_space<vmem>>, %arg8: memref<1x128xf32, #tpu.memory_space<vmem>>, %arg9: memref<16x128xbf16, #tpu.memory_space<vmem>>, %arg10: memref<16x128xf32, #tpu.memory_space<vmem>>, %arg11: memref<16x128xf32, #tpu.memory_space<vmem>>) attributes {dimension_semantics = [#tpu.dimension_semantics<parallel>, #tpu.dimension_semantics<arbitrary>], iteration_bounds = array<i64: 1, 2>, scalar_prefetch = 0 : i64, scratch_operands = 1 : i64, tpu.core_type = #tpu.core_type<tc>, window_params = [{transform_indices = @transform_0, window_bounds = array<i64: 16, 512>}, {transform_indices = @transform_1, window_bounds = array<i64: 512, 128>}, {pipeline_mode = #tpu.pipeline_mode<synchronous>, transform_indices = @transform_2, window_bounds = array<i64: 1, 128>}, {pipeline_mode = #tpu.pipeline_mode<synchronous>, transform_indices = @transform_3, window_bounds = array<i64: 128, 256>}, {pipeline_mode = #tpu.pipeline_mode<synchronous>, transform_indices = @transform_4, window_bounds = array<i64: 1, 256>}, {pipeline_mode = #tpu.pipeline_mode<synchronous>, transform_indices = @transform_5, window_bounds = array<i64: 128, 128>}, {pipeline_mode = #tpu.pipeline_mode<synchronous>, transform_indices = @transform_6, window_bounds = array<i64: 1, 128>}, {transform_indices = @transform_7, window_bounds = array<i64: 16, 128>}, {transform_indices = @transform_8, window_bounds = array<i64: 16, 128>}]} {
    %c0_i32 = arith.constant 0 : i32
    %0 = arith.cmpi eq, %arg1, %c0_i32 : i32
    %1 = arith.extui %0 : i1 to i32
    %c0_i32_0 = arith.constant 0 : i32
    %2 = arith.cmpi ne, %1, %c0_i32_0 : i32
    scf.if %2 {
      %cst_9 = arith.constant 0.000000e+00 : f32
      %13 = vector.broadcast %cst_9 : f32 to vector<16x128xf32>
      %c0_10 = arith.constant 0 : index
      %c0_11 = arith.constant 0 : index
      %14 = vector.load %arg11[%c0_10, %c0_11] : memref<16x128xf32, #tpu.memory_space<vmem>>, vector<16x128xf32>
      tpu.vector_store %arg11[%c0_10, %c0_11], %13 {strides = array<i32>} : memref<16x128xf32, #tpu.memory_space<vmem>>, vector<16x128xf32>,
    } else {
    }
    %c0 = arith.constant 0 : index
    %c0_1 = arith.constant 0 : index
    %3 = vector.load %arg11[%c0, %c0_1] : memref<16x128xf32, #tpu.memory_space<vmem>>, vector<16x128xf32>
    %c0_2 = arith.constant 0 : index
    %c0_3 = arith.constant 0 : index
    %4 = vector.load %arg2[%c0_2, %c0_3] : memref<16x512xf32, #tpu.memory_space<vmem>>, vector<16x512xf32>
    %5 = arith.truncf %4 : vector<16x512xf32> to vector<16x512xbf16>
    %c0_4 = arith.constant 0 : index
    %c0_5 = arith.constant 0 : index
    %6 = vector.load %arg3[%c0_4, %c0_5] : memref<512x128xbf16, #tpu.memory_space<vmem>>, vector<512x128xbf16>
    %cst = arith.constant dense<0.000000e+00> : vector<16x128xf32>
    %7 = tpu.matmul %5, %6, %cst {dimension_numbers = #tpu.dot_dimension_numbers<[1], [0], [0], [1], [0, 0, 1, 1], [], []>} : vector<16x512xbf16>, vector<512x128xbf16>, vector<16x128xf32> -> vector<16x128xf32>
    %8 = arith.addf %3, %7 : vector<16x128xf32>
    %c0_6 = arith.constant 0 : index
    %c0_7 = arith.constant 0 : index
    %9 = vector.load %arg11[%c0_6, %c0_7] : memref<16x128xf32, #tpu.memory_space<vmem>>, vector<16x128xf32>
    tpu.vector_store %arg11[%c0_6, %c0_7], %8 {strides = array<i32>} : memref<16x128xf32, #tpu.memory_space<vmem>>, vector<16x128xf32>,
    %c1_i32 = arith.constant 1 : i32
    %10 = arith.cmpi eq, %arg1, %c1_i32 : i32
    %11 = arith.extui %10 : i1 to i32
    %c0_i32_8 = arith.constant 0 : i32
    %12 = arith.cmpi ne, %11, %c0_i32_8 : i32
    scf.if %12 {
      %c0_9 = arith.constant 0 : index
      %c0_10 = arith.constant 0 : index
      %13 = vector.load %arg11[%c0_9, %c0_10] : memref<16x128xf32, #tpu.memory_space<vmem>>, vector<16x128xf32>
      %c0_11 = arith.constant 0 : index
      %c0_12 = arith.constant 0 : index
      %14 = vector.load %arg4[%c0_11, %c0_12] : memref<1x128xf32, #tpu.memory_space<vmem>>, vector<1x128xf32>
      %15 = vector.broadcast %14 : vector<1x128xf32> to vector<16x128xf32>
      %16 = arith.addf %13, %15 : vector<16x128xf32>
      %cst_13 = arith.constant 0.000000e+00 : f32
      %17 = vector.broadcast %cst_13 : f32 to vector<16x128xf32>
      %18 = arith.maximumf %16, %17 : vector<16x128xf32>
      %19 = arith.truncf %18 : vector<16x128xf32> to vector<16x128xbf16>
      %c0_14 = arith.constant 0 : index
      %c0_15 = arith.constant 0 : index
      %20 = vector.load %arg5[%c0_14, %c0_15] : memref<128x256xbf16, #tpu.memory_space<vmem>>, vector<128x256xbf16>
      %cst_16 = arith.constant dense<0.000000e+00> : vector<16x256xf32>
      %21 = tpu.matmul %19, %20, %cst_16 {dimension_numbers = #tpu.dot_dimension_numbers<[1], [0], [0], [1], [0, 0, 1, 1], [], []>} : vector<16x128xbf16>, vector<128x256xbf16>, vector<16x256xf32> -> vector<16x256xf32>
      %c0_17 = arith.constant 0 : index
      %c0_18 = arith.constant 0 : index
      %22 = vector.load %arg6[%c0_17, %c0_18] : memref<1x256xf32, #tpu.memory_space<vmem>>, vector<1x256xf32>
      %23 = vector.broadcast %22 : vector<1x256xf32> to vector<16x256xf32>
      %24 = arith.addf %21, %23 : vector<16x256xf32>
      %25 = vector.extract_strided_slice %24 {offsets = [0, 0], sizes = [16, 128], strides = [1, 1]} : vector<16x256xf32> to vector<16x128xf32>
      %26 = vector.extract_strided_slice %24 {offsets = [0, 128], sizes = [16, 128], strides = [1, 1]} : vector<16x256xf32> to vector<16x128xf32>
      %cst_19 = arith.constant 0.000000e+00 : f32
      %27 = vector.broadcast %cst_19 : f32 to vector<16x128xf32>
      %28 = arith.maximumf %26, %27 : vector<16x128xf32>
      %29 = arith.truncf %28 : vector<16x128xf32> to vector<16x128xbf16>
      %c0_20 = arith.constant 0 : index
      %c0_21 = arith.constant 0 : index
      %30 = vector.load %arg7[%c0_20, %c0_21] : memref<128x128xbf16, #tpu.memory_space<vmem>>, vector<128x128xbf16>
      %cst_22 = arith.constant dense<0.000000e+00> : vector<16x128xf32>
      %31 = tpu.matmul %29, %30, %cst_22 {dimension_numbers = #tpu.dot_dimension_numbers<[1], [0], [0], [1], [0, 0, 1, 1], [], []>} : vector<16x128xbf16>, vector<128x128xbf16>, vector<16x128xf32> -> vector<16x128xf32>
      %c0_23 = arith.constant 0 : index
      %c0_24 = arith.constant 0 : index
      %32 = vector.load %arg8[%c0_23, %c0_24] : memref<1x128xf32, #tpu.memory_space<vmem>>, vector<1x128xf32>
      %33 = vector.broadcast %32 : vector<1x128xf32> to vector<16x128xf32>
      %34 = arith.addf %31, %33 : vector<16x128xf32>
      %35 = arith.mulf %34, %34 : vector<16x128xf32>
      %cst_25 = arith.constant dense<0.000000e+00> : vector<16xf32>
      %36 = vector.multi_reduction <add>, %35, %cst_25 [1] : vector<16x128xf32> to vector<16xf32>
      %37 = vector.shape_cast %36 : vector<16xf32> to vector<16x1xf32>
      %cst_26 = arith.constant 1.000000e-24 : f32
      %38 = vector.broadcast %cst_26 : f32 to vector<16x1xf32>
      %39 = arith.maximumf %37, %38 : vector<16x1xf32>
      %40 = math.rsqrt %39 : vector<16x1xf32>
      %41 = vector.broadcast %40 : vector<16x1xf32> to vector<16x128xf32>
      %42 = arith.mulf %34, %41 : vector<16x128xf32>
      %43 = arith.truncf %25 : vector<16x128xf32> to vector<16x128xbf16>
      %c0_27 = arith.constant 0 : index
      %c0_28 = arith.constant 0 : index
      %44 = vector.load %arg9[%c0_27, %c0_28] : memref<16x128xbf16, #tpu.memory_space<vmem>>, vector<16x128xbf16>
      tpu.vector_store %arg9[%c0_27, %c0_28], %43 {strides = array<i32>} : memref<16x128xbf16, #tpu.memory_space<vmem>>, vector<16x128xbf16>,
      %c0_29 = arith.constant 0 : index
      %c0_30 = arith.constant 0 : index
      %45 = vector.load %arg10[%c0_29, %c0_30] : memref<16x128xf32, #tpu.memory_space<vmem>>, vector<16x128xf32>
      tpu.vector_store %arg10[%c0_29, %c0_30], %42 {strides = array<i32>} : memref<16x128xf32, #tpu.memory_space<vmem>>, vector<16x128xf32>,
    } else {
    }
    return
  }
  func.func @transform_0(%arg0: i32, %arg1: i32) -> (i32, i32) {
    %c0_i32 = arith.constant 0 : i32
    return %arg0, %arg1 : i32, i32
  }
  func.func @transform_1(%arg0: i32, %arg1: i32) -> (i32, i32) {
    %c0_i32 = arith.constant 0 : i32
    %c0_i32_0 = arith.constant 0 : i32
    return %arg1, %c0_i32 : i32, i32
  }
  func.func @transform_2(%arg0: i32, %arg1: i32) -> (i32, i32) {
    %c0_i32 = arith.constant 0 : i32
    %c0_i32_0 = arith.constant 0 : i32
    %c0_i32_1 = arith.constant 0 : i32
    return %c0_i32, %c0_i32_0 : i32, i32
  }
  func.func @transform_3(%arg0: i32, %arg1: i32) -> (i32, i32) {
    %c0_i32 = arith.constant 0 : i32
    %c0_i32_0 = arith.constant 0 : i32
    %c0_i32_1 = arith.constant 0 : i32
    return %c0_i32, %c0_i32_0 : i32, i32
  }
  func.func @transform_4(%arg0: i32, %arg1: i32) -> (i32, i32) {
    %c0_i32 = arith.constant 0 : i32
    %c0_i32_0 = arith.constant 0 : i32
    %c0_i32_1 = arith.constant 0 : i32
    return %c0_i32, %c0_i32_0 : i32, i32
  }
  func.func @transform_5(%arg0: i32, %arg1: i32) -> (i32, i32) {
    %c0_i32 = arith.constant 0 : i32
    %c0_i32_0 = arith.constant 0 : i32
    %c0_i32_1 = arith.constant 0 : i32
    return %c0_i32, %c0_i32_0 : i32, i32
  }
  func.func @transform_6(%arg0: i32, %arg1: i32) -> (i32, i32) {
    %c0_i32 = arith.constant 0 : i32
    %c0_i32_0 = arith.constant 0 : i32
    %c0_i32_1 = arith.constant 0 : i32
    return %c0_i32, %c0_i32_0 : i32, i32
  }
  func.func @transform_7(%arg0: i32, %arg1: i32) -> (i32, i32) {
    %c0_i32 = arith.constant 0 : i32
    %c0_i32_0 = arith.constant 0 : i32
    return %arg0, %c0_i32 : i32, i32
  }
  func.func @transform_8(%arg0: i32, %arg1: i32) -> (i32, i32) {
    %c0_i32 = arith.constant 0 : i32
    %c0_i32_0 = arith.constant 0 : i32
    return %arg0, %c0_i32 : i32, i32
  }
}

module attributes {stable_mosaic.version = 11 : i64} {
  func.func @simclr_kernel(%arg0: i32, %arg1: i32, %arg2: memref<16x512xf32, #tpu.memory_space<vmem>>, %arg3: memref<512x128xbf16, #tpu.memory_space<vmem>>, %arg4: memref<1x128xf32, #tpu.memory_space<vmem>>, %arg5: memref<128x256xbf16, #tpu.memory_space<vmem>>, %arg6: memref<1x256xf32, #tpu.memory_space<vmem>>, %arg7: memref<128x128xbf16, #tpu.memory_space<vmem>>, %arg8: memref<1x128xf32, #tpu.memory_space<vmem>>, %arg9: memref<16x128xbf16, #tpu.memory_space<vmem>>, %arg10: memref<16x128xf32, #tpu.memory_space<vmem>>, %arg11: memref<16x128xf32, #tpu.memory_space<vmem>>) attributes {dimension_semantics = [#tpu.dimension_semantics<parallel>, #tpu.dimension_semantics<arbitrary>], iteration_bounds = array<i64: 1, 2>, scalar_prefetch = 0 : i64, scratch_operands = 1 : i64, tpu.core_type = #tpu.core_type<tc>, window_params = [{transform_indices = @transform_0, window_bounds = array<i64: 16, 512>}, {transform_indices = @transform_1, window_bounds = array<i64: 512, 128>}, {pipeline_mode = #tpu.pipeline_mode<synchronous>, transform_indices = @transform_2, window_bounds = array<i64: 1, 128>}, {pipeline_mode = #tpu.pipeline_mode<synchronous>, transform_indices = @transform_3, window_bounds = array<i64: 128, 256>}, {pipeline_mode = #tpu.pipeline_mode<synchronous>, transform_indices = @transform_4, window_bounds = array<i64: 1, 256>}, {pipeline_mode = #tpu.pipeline_mode<synchronous>, transform_indices = @transform_5, window_bounds = array<i64: 128, 128>}, {pipeline_mode = #tpu.pipeline_mode<synchronous>, transform_indices = @transform_6, window_bounds = array<i64: 1, 128>}, {transform_indices = @transform_7, window_bounds = array<i64: 16, 128>}, {transform_indices = @transform_8, window_bounds = array<i64: 16, 128>}]} {
    %c0_i32 = arith.constant 0 : i32
    %0 = arith.cmpi eq, %arg1, %c0_i32 : i32
    %1 = arith.extui %0 : i1 to i32
    %c0_i32_0 = arith.constant 0 : i32
    %2 = arith.cmpi ne, %1, %c0_i32_0 : i32
    scf.if %2 {
      %cst_9 = arith.constant 0.000000e+00 : f32
      %13 = vector.broadcast %cst_9 : f32 to vector<16x128xf32>
      %c0_10 = arith.constant 0 : index
      %c0_11 = arith.constant 0 : index
      %14 = vector.load %arg11[%c0_10, %c0_11] : memref<16x128xf32, #tpu.memory_space<vmem>>, vector<16x128xf32>
      tpu.vector_store %arg11[%c0_10, %c0_11], %13 {strides = array<i32>} : memref<16x128xf32, #tpu.memory_space<vmem>>, vector<16x128xf32>,
    } else {
    }
    %c0 = arith.constant 0 : index
    %c0_1 = arith.constant 0 : index
    %3 = vector.load %arg11[%c0, %c0_1] : memref<16x128xf32, #tpu.memory_space<vmem>>, vector<16x128xf32>
    %c0_2 = arith.constant 0 : index
    %c0_3 = arith.constant 0 : index
    %4 = vector.load %arg2[%c0_2, %c0_3] : memref<16x512xf32, #tpu.memory_space<vmem>>, vector<16x512xf32>
    %5 = arith.truncf %4 : vector<16x512xf32> to vector<16x512xbf16>
    %c0_4 = arith.constant 0 : index
    %c0_5 = arith.constant 0 : index
    %6 = vector.load %arg3[%c0_4, %c0_5] : memref<512x128xbf16, #tpu.memory_space<vmem>>, vector<512x128xbf16>
    %cst = arith.constant dense<0.000000e+00> : vector<16x128xf32>
    %7 = tpu.matmul %5, %6, %cst {dimension_numbers = #tpu.dot_dimension_numbers<[1], [0], [0], [1], [0, 0, 1, 1], [], []>} : vector<16x512xbf16>, vector<512x128xbf16>, vector<16x128xf32> -> vector<16x128xf32>
    %8 = arith.addf %3, %7 : vector<16x128xf32>
    %c0_6 = arith.constant 0 : index
    %c0_7 = arith.constant 0 : index
    %9 = vector.load %arg11[%c0_6, %c0_7] : memref<16x128xf32, #tpu.memory_space<vmem>>, vector<16x128xf32>
    tpu.vector_store %arg11[%c0_6, %c0_7], %8 {strides = array<i32>} : memref<16x128xf32, #tpu.memory_space<vmem>>, vector<16x128xf32>,
    %c1_i32 = arith.constant 1 : i32
    %10 = arith.cmpi eq, %arg1, %c1_i32 : i32
    %11 = arith.extui %10 : i1 to i32
    %c0_i32_8 = arith.constant 0 : i32
    %12 = arith.cmpi ne, %11, %c0_i32_8 : i32
    scf.if %12 {
      %c0_9 = arith.constant 0 : index
      %c0_10 = arith.constant 0 : index
      %13 = vector.load %arg11[%c0_9, %c0_10] : memref<16x128xf32, #tpu.memory_space<vmem>>, vector<16x128xf32>
      %c0_11 = arith.constant 0 : index
      %c0_12 = arith.constant 0 : index
      %14 = vector.load %arg4[%c0_11, %c0_12] : memref<1x128xf32, #tpu.memory_space<vmem>>, vector<1x128xf32>
      %15 = vector.broadcast %14 : vector<1x128xf32> to vector<16x128xf32>
      %16 = arith.addf %13, %15 : vector<16x128xf32>
      %cst_13 = arith.constant 0.000000e+00 : f32
      %17 = vector.broadcast %cst_13 : f32 to vector<16x128xf32>
      %18 = arith.maximumf %16, %17 : vector<16x128xf32>
      %19 = arith.truncf %18 : vector<16x128xf32> to vector<16x128xbf16>
      %c0_14 = arith.constant 0 : index
      %c0_15 = arith.constant 0 : index
      %20 = vector.load %arg5[%c0_14, %c0_15] : memref<128x256xbf16, #tpu.memory_space<vmem>>, vector<128x256xbf16>
      %cst_16 = arith.constant dense<0.000000e+00> : vector<16x256xf32>
      %21 = tpu.matmul %19, %20, %cst_16 {dimension_numbers = #tpu.dot_dimension_numbers<[1], [0], [0], [1], [0, 0, 1, 1], [], []>} : vector<16x128xbf16>, vector<128x256xbf16>, vector<16x256xf32> -> vector<16x256xf32>
      %c0_17 = arith.constant 0 : index
      %c0_18 = arith.constant 0 : index
      %22 = vector.load %arg6[%c0_17, %c0_18] : memref<1x256xf32, #tpu.memory_space<vmem>>, vector<1x256xf32>
      %23 = vector.broadcast %22 : vector<1x256xf32> to vector<16x256xf32>
      %24 = arith.addf %21, %23 : vector<16x256xf32>
      %25 = vector.extract_strided_slice %24 {offsets = [0, 0], sizes = [16, 128], strides = [1, 1]} : vector<16x256xf32> to vector<16x128xf32>
      %26 = vector.extract_strided_slice %24 {offsets = [0, 128], sizes = [16, 128], strides = [1, 1]} : vector<16x256xf32> to vector<16x128xf32>
      %cst_19 = arith.constant 0.000000e+00 : f32
      %27 = vector.broadcast %cst_19 : f32 to vector<16x128xf32>
      %28 = arith.maximumf %26, %27 : vector<16x128xf32>
      %29 = arith.truncf %28 : vector<16x128xf32> to vector<16x128xbf16>
      %c0_20 = arith.constant 0 : index
      %c0_21 = arith.constant 0 : index
      %30 = vector.load %arg7[%c0_20, %c0_21] : memref<128x128xbf16, #tpu.memory_space<vmem>>, vector<128x128xbf16>
      %cst_22 = arith.constant dense<0.000000e+00> : vector<16x128xf32>
      %31 = tpu.matmul %29, %30, %cst_22 {dimension_numbers = #tpu.dot_dimension_numbers<[1], [0], [0], [1], [0, 0, 1, 1], [], []>} : vector<16x128xbf16>, vector<128x128xbf16>, vector<16x128xf32> -> vector<16x128xf32>
      %c0_23 = arith.constant 0 : index
      %c0_24 = arith.constant 0 : index
      %32 = vector.load %arg8[%c0_23, %c0_24] : memref<1x128xf32, #tpu.memory_space<vmem>>, vector<1x128xf32>
      %33 = vector.broadcast %32 : vector<1x128xf32> to vector<16x128xf32>
      %34 = arith.addf %31, %33 : vector<16x128xf32>
      %35 = arith.mulf %34, %34 : vector<16x128xf32>
      %cst_25 = arith.constant dense<0.000000e+00> : vector<16xf32>
      %36 = vector.multi_reduction <add>, %35, %cst_25 [1] : vector<16x128xf32> to vector<16xf32>
      %37 = vector.shape_cast %36 : vector<16xf32> to vector<16x1xf32>
      %cst_26 = arith.constant 1.000000e-24 : f32
      %38 = vector.broadcast %cst_26 : f32 to vector<16x1xf32>
      %39 = arith.maximumf %37, %38 : vector<16x1xf32>
      %40 = math.rsqrt %39 : vector<16x1xf32>
      %41 = vector.broadcast %40 : vector<16x1xf32> to vector<16x128xf32>
      %42 = arith.mulf %34, %41 : vector<16x128xf32>
      %43 = arith.truncf %25 : vector<16x128xf32> to vector<16x128xbf16>
      %c0_27 = arith.constant 0 : index
      %c0_28 = arith.constant 0 : index
      %44 = vector.load %arg9[%c0_27, %c0_28] : memref<16x128xbf16, #tpu.memory_space<vmem>>, vector<16x128xbf16>
      tpu.vector_store %arg9[%c0_27, %c0_28], %43 {strides = array<i32>} : memref<16x128xbf16, #tpu.memory_space<vmem>>, vector<16x128xbf16>,
      %c0_29 = arith.constant 0 : index
      %c0_30 = arith.constant 0 : index
      %45 = vector.load %arg10[%c0_29, %c0_30] : memref<16x128xf32, #tpu.memory_space<vmem>>, vector<16x128xf32>
      tpu.vector_store %arg10[%c0_29, %c0_30], %42 {strides = array<i32>} : memref<16x128xf32, #tpu.memory_space<vmem>>, vector<16x128xf32>,
    } else {
    }
    return
  }
  func.func @transform_0(%arg0: i32, %arg1: i32) -> (i32, i32) {
    %c0_i32 = arith.constant 0 : i32
    return %arg0, %arg1 : i32, i32
  }
  func.func @transform_1(%arg0: i32, %arg1: i32) -> (i32, i32) {
    %c0_i32 = arith.constant 0 : i32
    %c0_i32_0 = arith.constant 0 : i32
    return %arg1, %c0_i32 : i32, i32
  }
  func.func @transform_2(%arg0: i32, %arg1: i32) -> (i32, i32) {
    %c0_i32 = arith.constant 0 : i32
    %c0_i32_0 = arith.constant 0 : i32
    %c0_i32_1 = arith.constant 0 : i32
    return %c0_i32, %c0_i32_0 : i32, i32
  }
  func.func @transform_3(%arg0: i32, %arg1: i32) -> (i32, i32) {
    %c0_i32 = arith.constant 0 : i32
    %c0_i32_0 = arith.constant 0 : i32
    %c0_i32_1 = arith.constant 0 : i32
    return %c0_i32, %c0_i32_0 : i32, i32
  }
  func.func @transform_4(%arg0: i32, %arg1: i32) -> (i32, i32) {
    %c0_i32 = arith.constant 0 : i32
    %c0_i32_0 = arith.constant 0 : i32
    %c0_i32_1 = arith.constant 0 : i32
    return %c0_i32, %c0_i32_0 : i32, i32
  }
  func.func @transform_5(%arg0: i32, %arg1: i32) -> (i32, i32) {
    %c0_i32 = arith.constant 0 : i32
    %c0_i32_0 = arith.constant 0 : i32
    %c0_i32_1 = arith.constant 0 : i32
    return %c0_i32, %c0_i32_0 : i32, i32
  }
  func.func @transform_6(%arg0: i32, %arg1: i32) -> (i32, i32) {
    %c0_i32 = arith.constant 0 : i32
    %c0_i32_0 = arith.constant 0 : i32
    %c0_i32_1 = arith.constant 0 : i32
    return %c0_i32, %c0_i32_0 : i32, i32
  }
  func.func @transform_7(%arg0: i32, %arg1: i32) -> (i32, i32) {
    %c0_i32 = arith.constant 0 : i32
    %c0_i32_0 = arith.constant 0 : i32
    return %arg0, %c0_i32 : i32, i32
  }
  func.func @transform_8(%arg0: i32, %arg1: i32) -> (i32, i32) {
    %c0_i32 = arith.constant 0 : i32
    %c0_i32_0 = arith.constant 0 : i32
    return %arg0, %c0_i32 : i32, i32
  }
}

</mosaic_0001>

<llo_original>
// kernel: tpu_custom_call.1
$region0: #{tpu_custom_call.1}
  #allocation0 [shape = 'u32[]', space=smem, size = 0x4, offset = 0x4, fixed_abs, tag = 'smem constant byte address 0x4 - core index']
  #allocation1 [shape = 'u32[144,128]{1,0:T(1,128)}', space=vmem, size = 0x12000, scoped, tag = 'internal scratch']
  #allocation2 [shape = 'f32[16,128]{1,0:T(8,128)}', space=vmem, size = 0x2000, scoped, tag = 'scratch operand']
  %s0 = inlined_call_operand.hbm [shape: f32[16,1024], index: 0, kind: input, shape index: {}]
  %s1 = inlined_call_operand.hbm [shape: bf16[1024,128], index: 1, kind: input, shape index: {}]
  %s2 = inlined_call_operand.vmem [shape: f32[1,128], index: 2, kind: input, shape index: {}]
  %s3 = inlined_call_operand.hbm [shape: bf16[128,256], index: 3, kind: input, shape index: {}]
  %s4 = inlined_call_operand.vmem [shape: f32[1,256], index: 4, kind: input, shape index: {}]
  %s5 = inlined_call_operand.hbm [shape: bf16[128,128], index: 5, kind: input, shape index: {}]
  %s6 = inlined_call_operand.vmem [shape: f32[1,128], index: 6, kind: input, shape index: {}]
  %s7 = inlined_call_operand.hbm [shape: bf16[16,128], index: 7, kind: output, shape index: {0}]
  %s8 = inlined_call_operand.hbm [shape: f32[16,128], index: 8, kind: output, shape index: {1}]
  %9 = xla_tuple %s7, %s8
  %s10 = sld [smem:[#allocation0]]
  $region93: #{tpu_custom_call.1} parent=0
    _
  %s12 = ssub.s32 1, %s10
  %s13 = scalar_select 0, %s12, %s10
  $region1: #{tpu_custom_call.1} parent=0
    #allocation3 [shape = 'u8[65536]{0}', space=vmem, size = 0x10000, scoped, tag = 'input window, operand 0']
    #allocation4 [shape = 's32[2]{0}', space=sflag, size = 0x8, scoped, tag = 'scoped memory for tpu_custom_call.1']
    #allocation5 [shape = 's32[2]{0}', space=sflag, size = 0x8, scoped, tag = 'scoped memory for tpu_custom_call.1']
    #allocation6 [shape = 'u8[262144]{0}', space=vmem, size = 0x40000, scoped, tag = 'input window, operand 1']
    #allocation7 [shape = 's32[2]{0}', space=sflag, size = 0x8, scoped, tag = 'scoped memory for tpu_custom_call.1']
    #allocation8 [shape = 'u8[65536]{0}', space=vmem, size = 0x10000, scoped, tag = 'input window, operand 3, single buffered']
    #allocation9 [shape = 'u8[32768]{0}', space=vmem, size = 0x8000, scoped, tag = 'input window, operand 5, single buffered']
    #allocation10 [shape = 's32[1]{0}', space=sflag, size = 0x4, scoped, tag = 'scoped memory for tpu_custom_call.1']
    #allocation11 [shape = 'u8[4096]{0}', space=vmem, size = 0x1000, scoped, tag = 'output window, operand 0, single buffered']
    #allocation12 [shape = 'u8[8192]{0}', space=vmem, size = 0x2000, scoped, tag = 'output window, operand 1, single buffered']
    #allocation13 [shape = 's32[1]{0}', space=sflag, size = 0x4, scoped, tag = 'scoped memory for tpu_custom_call.1']
    %14 = vsyncpa [#allocation4], 0
    %s15 = scalar_lea.sflag [#allocation4], 1
    %16 = vsyncpa %s15, 0
    %17 = vsyncpa [#allocation7], 0
    %s18 = scalar_lea.sflag [#allocation7], 1
    %19 = vsyncpa %s18, 0
    %20 = vsyncpa [#allocation10], 0
    %21 = vsyncpa [#allocation5], 0
    %22 = vsyncpa [#allocation13], 0
    loop: start=0, step=1, limit=4
    $region2: #{tpu_custom_call.1} parent=1 // loop_pre_header
      _
    $region3: #{tpu_custom_call.1} parent=1 // loop_header
      %s24 = sphi 0, %s28
      %p25 = scmp.ge.s32.totalorder %s24, 4
      %s31 = sphi 0, %s43
      %s32 = sphi 0, %s39
      %s33 = sphi 0, %s31
      %s34 = sphi 0, %s32
      %s35 = sphi 0, %s33
      %s36 = sphi 0, %s34
      %s48 = sphi 0, %s50
      %s51 = sphi 0, %s48
      %s52 = sphi 0, %s51
      %s68 = sphi 0, %s52
      %s74 = sphi 0, %s76
      %s77 = sphi 0, %s74
      %s78 = sphi 0, %s77
      %s94 = sphi 0, %s78
      %s98 = sphi 0, %s98
      %s100 = sphi 0, %s98
      %s101 = sphi 0, %s100
      %s115 = sphi 0, %s101
      %s119 = sphi 0, %s119
      %s121 = sphi 0, %s119
      %s122 = sphi 0, %s121
      %s136 = sphi 0, %s122
      %s140 = sphi 0, %s140
      %s142 = sphi 0, %s140
      %s143 = sphi 0, %s142
      %s157 = sphi 0, %s143
      %s161 = sphi 0, %s161
      %s163 = sphi 0, %s161
      %s164 = sphi 0, %s163
      %s178 = sphi 0, %s164
      %s182 = sphi 0, %s182
      %s184 = sphi 0, %s182
      %s185 = sphi 0, %s184
      %s199 = sphi 0, %s185
      %s205 = sphi 0, %s207
      %s208 = sphi 0, %s205
      %s209 = sphi 0, %s208
      %s225 = sphi 0, %s209
      %s231 = sphi 0, %s233
      %s234 = sphi 0, %s231
      %s235 = sphi 0, %s234
      %s251 = sphi 0, %s235
    $region4: #{tpu_custom_call.1} parent=1 // loop_header_branch
      %27 = sbr.rel (%p25) target = $region8
    $region5: #{tpu_custom_call.1} parent=1 // loop_body
      %s29 = ssub.s32 %s24, 1
      %s30 = ssub.s32 %s24, 2
      %s37 = sadd.s32 1, %s32
      %p38 = scmp.ge.s32.totalorder %s37, 2
      %s39 = scalar_select %p38, 0, %s37
      %s40 = sadd.s32 1, %s31
      %s41 = scalar_select %p38, %s40, %s31
      %p42 = scmp.ge.s32.totalorder %s41, 1
      %s43 = scalar_select %p42, 0, %s41
      %s44 = ssub.s32 %s31, %s43
      %s45 = ssub.s32 %s32, %s39
      %s46 = sor.u32 %s44, %s45
      %p47 = scmp.eq.s32.totalorder %s46, 0
      %s49 = sadd.s32 %s48, 1
      %s50 = scalar_select %p47, %s48, %s49
      %p53 = pneg %p47
      %p54 = scmp.eq.s32.totalorder %s24, 1
      %p55 = por %p53, %p54
      %p56 = scmp.ne.s32.totalorder %s48, %s51
      %p57 = scmp.eq.s32.totalorder %s24, 0
      %p58 = por %p56, %p57
      %p59 = scmp.ne.s32.totalorder %s48, %s51
      %p60 = scmp.eq.s32.totalorder %s29, 1
      %p61 = por %p59, %p60
      %p62 = scmp.ne.s32.totalorder %s51, %s52
      %p63 = scmp.eq.s32.totalorder %s29, 0
      %p64 = por %p62, %p63
      %p65 = scmp.ne.s32.totalorder %s51, %s52
      %p66 = scmp.eq.s32.totalorder %s30, 1
      %p67 = por %p65, %p66
      %p69 = scmp.ne.s32.totalorder %s52, %s68
      %p70 = scmp.eq.s32.totalorder %s30, 0
      %p71 = por %p69, %p70
      %s72 = ssub.s32 %s32, %s39
      %p73 = scmp.eq.s32.totalorder %s72, 0
      %s75 = sadd.s32 %s74, 1
      %s76 = scalar_select %p73, %s74, %s75
      %p79 = pneg %p73
      %p80 = scmp.eq.s32.totalorder %s24, 1
      %p81 = por %p79, %p80
      %p82 = scmp.ne.s32.totalorder %s74, %s77
      %p83 = scmp.eq.s32.totalorder %s24, 0
      %p84 = por %p82, %p83
      %p85 = scmp.ne.s32.totalorder %s74, %s77
      %p86 = scmp.eq.s32.totalorder %s29, 1
      %p87 = por %p85, %p86
      %p88 = scmp.ne.s32.totalorder %s77, %s78
      %p89 = scmp.eq.s32.totalorder %s29, 0
      %p90 = por %p88, %p89
      %p91 = scmp.ne.s32.totalorder %s77, %s78
      %p92 = scmp.eq.s32.totalorder %s30, 1
      %p93 = por %p91, %p92
      %p95 = scmp.ne.s32.totalorder %s78, %s94
      %p96 = scmp.eq.s32.totalorder %s30, 0
      %p97 = por %p95, %p96
      %s99 = sadd.s32 %s98, 1
      %p102 = scmp.eq.s32.totalorder %s24, 1
      %p103 = scmp.ne.s32.totalorder %s98, %s100
      %p104 = scmp.eq.s32.totalorder %s24, 0
      %p105 = por %p103, %p104
      %p106 = scmp.ne.s32.totalorder %s98, %s100
      %p107 = scmp.eq.s32.totalorder %s29, 1
      %p108 = por %p106, %p107
      %p109 = scmp.ne.s32.totalorder %s100, %s101
      %p110 = scmp.eq.s32.totalorder %s29, 0
      %p111 = por %p109, %p110
      %p112 = scmp.ne.s32.totalorder %s100, %s101
      %p113 = scmp.eq.s32.totalorder %s30, 1
      %p114 = por %p112, %p113
      %p116 = scmp.ne.s32.totalorder %s101, %s115
      %p117 = scmp.eq.s32.totalorder %s30, 0
      %p118 = por %p116, %p117
      %s120 = sadd.s32 %s119, 1
      %p123 = scmp.eq.s32.totalorder %s24, 1
      %p124 = scmp.ne.s32.totalorder %s119, %s121
      %p125 = scmp.eq.s32.totalorder %s24, 0
      %p126 = por %p124, %p125
      %p127 = scmp.ne.s32.totalorder %s119, %s121
      %p128 = scmp.eq.s32.totalorder %s29, 1
      %p129 = por %p127, %p128
      %p130 = scmp.ne.s32.totalorder %s121, %s122
      %p131 = scmp.eq.s32.totalorder %s29, 0
      %p132 = por %p130, %p131
      %p133 = scmp.ne.s32.totalorder %s121, %s122
      %p134 = scmp.eq.s32.totalorder %s30, 1
      %p135 = por %p133, %p134
      %p137 = scmp.ne.s32.totalorder %s122, %s136
      %p138 = scmp.eq.s32.totalorder %s30, 0
      %p139 = por %p137, %p138
      %s141 = sadd.s32 %s140, 1
      %p144 = scmp.eq.s32.totalorder %s24, 1
      %p145 = scmp.ne.s32.totalorder %s140, %s142
      %p146 = scmp.eq.s32.totalorder %s24, 0
      %p147 = por %p145, %p146
      %p148 = scmp.ne.s32.totalorder %s140, %s142
      %p149 = scmp.eq.s32.totalorder %s29, 1
      %p150 = por %p148, %p149
      %p151 = scmp.ne.s32.totalorder %s142, %s143
      %p152 = scmp.eq.s32.totalorder %s29, 0
      %p153 = por %p151, %p152
      %p154 = scmp.ne.s32.totalorder %s142, %s143
      %p155 = scmp.eq.s32.totalorder %s30, 1
      %p156 = por %p154, %p155
      %p158 = scmp.ne.s32.totalorder %s143, %s157
      %p159 = scmp.eq.s32.totalorder %s30, 0
      %p160 = por %p158, %p159
      %s162 = sadd.s32 %s161, 1
      %p165 = scmp.eq.s32.totalorder %s24, 1
      %p166 = scmp.ne.s32.totalorder %s161, %s163
      %p167 = scmp.eq.s32.totalorder %s24, 0
      %p168 = por %p166, %p167
      %p169 = scmp.ne.s32.totalorder %s161, %s163
      %p170 = scmp.eq.s32.totalorder %s29, 1
      %p171 = por %p169, %p170
      %p172 = scmp.ne.s32.totalorder %s163, %s164
      %p173 = scmp.eq.s32.totalorder %s29, 0
      %p174 = por %p172, %p173
      %p175 = scmp.ne.s32.totalorder %s163, %s164
      %p176 = scmp.eq.s32.totalorder %s30, 1
      %p177 = por %p175, %p176
      %p179 = scmp.ne.s32.totalorder %s164, %s178
      %p180 = scmp.eq.s32.totalorder %s30, 0
      %p181 = por %p179, %p180
      %s183 = sadd.s32 %s182, 1
      %p186 = scmp.eq.s32.totalorder %s24, 1
      %p187 = scmp.ne.s32.totalorder %s182, %s184
      %p188 = scmp.eq.s32.totalorder %s24, 0
      %p189 = por %p187, %p188
      %p190 = scmp.ne.s32.totalorder %s182, %s184
      %p191 = scmp.eq.s32.totalorder %s29, 1
      %p192 = por %p190, %p191
      %p193 = scmp.ne.s32.totalorder %s184, %s185
      %p194 = scmp.eq.s32.totalorder %s29, 0
      %p195 = por %p193, %p194
      %p196 = scmp.ne.s32.totalorder %s184, %s185
      %p197 = scmp.eq.s32.totalorder %s30, 1
      %p198 = por %p196, %p197
      %p200 = scmp.ne.s32.totalorder %s185, %s199
      %p201 = scmp.eq.s32.totalorder %s30, 0
      %p202 = por %p200, %p201
      %s203 = ssub.s32 %s31, %s43
      %p204 = scmp.eq.s32.totalorder %s203, 0
      %s206 = sadd.s32 %s205, 1
      %s207 = scalar_select %p204, %s205, %s206
      %p210 = pneg %p204
      %p211 = scmp.eq.s32.totalorder %s24, 1
      %p212 = por %p210, %p211
      %p213 = scmp.ne.s32.totalorder %s205, %s208
      %p214 = scmp.eq.s32.totalorder %s24, 0
      %p215 = por %p213, %p214
      %p216 = scmp.ne.s32.totalorder %s205, %s208
      %p217 = scmp.eq.s32.totalorder %s29, 1
      %p218 = por %p216, %p217
      %p219 = scmp.ne.s32.totalorder %s208, %s209
      %p220 = scmp.eq.s32.totalorder %s29, 0
      %p221 = por %p219, %p220
      %p222 = scmp.ne.s32.totalorder %s208, %s209
      %p223 = scmp.eq.s32.totalorder %s30, 1
      %p224 = por %p222, %p223
      %p226 = scmp.ne.s32.totalorder %s209, %s225
      %p227 = scmp.eq.s32.totalorder %s30, 0
      %p228 = por %p226, %p227
      %s229 = ssub.s32 %s31, %s43
      %p230 = scmp.eq.s32.totalorder %s229, 0
      %s232 = sadd.s32 %s231, 1
      %s233 = scalar_select %p230, %s231, %s232
      %p236 = pneg %p230
      %p237 = scmp.eq.s32.totalorder %s24, 1
      %p238 = por %p236, %p237
      %p239 = scmp.ne.s32.totalorder %s231, %s234
      %p240 = scmp.eq.s32.totalorder %s24, 0
      %p241 = por %p239, %p240
      %p242 = scmp.ne.s32.totalorder %s231, %s234
      %p243 = scmp.eq.s32.totalorder %s29, 1
      %p244 = por %p242, %p243
      %p245 = scmp.ne.s32.totalorder %s234, %s235
      %p246 = scmp.eq.s32.totalorder %s29, 0
      %p247 = por %p245, %p246
      %p248 = scmp.ne.s32.totalorder %s234, %s235
      %p249 = scmp.eq.s32.totalorder %s30, 1
      %p250 = por %p248, %p249
      %p252 = scmp.ne.s32.totalorder %s235, %s251
      %p253 = scmp.eq.s32.totalorder %s30, 0
      %p254 = por %p252, %p253
      %p255 = scmp.le.s32.totalorder 1, %s24
      %p256 = scmp.lt.s32.totalorder %s24, 3
      %p257 = pnand %p255, %p256
      %p258 = pneg %p257
      // Predicated region
      $region9: #{tpu_custom_call.1} parent=5 // pred_check
        _
      $region10: #{tpu_custom_call.1} parent=5 // pred_check_branch
        %260 = sbr.rel (%p257) target = $region12
      $region11: #{tpu_custom_call.1} parent=5 // pred_region
        %s261 = ssub.s32 %s24, 1
        // Predicated region
        $region13: #{tpu_custom_call.1} parent=11 // pred_check
          %p262 = pneg %p111
        $region14: #{tpu_custom_call.1} parent=11 // pred_check_branch
          %264 = sbr.rel (%p262) target = $region16
        $region15: #{tpu_custom_call.1} parent=11 // pred_region
          _
        $region16: #{tpu_custom_call.1} parent=11 // pred_fallthru
          _
        // Predicated region
        $region17: #{tpu_custom_call.1} parent=11 // pred_check
          %p265 = pneg %p132
        $region18: #{tpu_custom_call.1} parent=11 // pred_check_branch
          %267 = sbr.rel (%p265) target = $region20
        $region19: #{tpu_custom_call.1} parent=11 // pred_region
          %s269 = ssub.s32 2048, 2048
          %270 = vsyncadd [#allocation7], %s269
          %s271 = sshll.u32 [#allocation8], 4
          %s272 = int_to_ptr.vmem [resolvable:$true] %s271
          %277 = dma.hbm_to_vmem [thread:$0]  %s3, 2048, %s272, [#allocation7], 128, 128, 8
        $region20: #{tpu_custom_call.1} parent=11 // pred_fallthru
          _
        // Predicated region
        $region21: #{tpu_custom_call.1} parent=11 // pred_check
          %p278 = pneg %p153
        $region22: #{tpu_custom_call.1} parent=11 // pred_check_branch
          %280 = sbr.rel (%p278) target = $region24
        $region23: #{tpu_custom_call.1} parent=11 // pred_region
          _
        $region24: #{tpu_custom_call.1} parent=11 // pred_fallthru
          _
        // Predicated region
        $region25: #{tpu_custom_call.1} parent=11 // pred_check
          %p281 = pneg %p174
        $region26: #{tpu_custom_call.1} parent=11 // pred_check_branch
          %283 = sbr.rel (%p281) target = $region28
        $region27: #{tpu_custom_call.1} parent=11 // pred_region
          %s285 = ssub.s32 1024, 1024
          %286 = vsyncadd [#allocation10], %s285
          %s287 = sshll.u32 [#allocation9], 4
          %s288 = int_to_ptr.vmem [resolvable:$true] %s287
          %293 = dma.hbm_to_vmem [thread:$0]  %s5, 1024, %s288, [#allocation10], 64, 64, 4
        $region28: #{tpu_custom_call.1} parent=11 // pred_fallthru
          _
        // Predicated region
        $region29: #{tpu_custom_call.1} parent=11 // pred_check
          %p294 = pneg %p195
        $region30: #{tpu_custom_call.1} parent=11 // pred_check_branch
          %296 = sbr.rel (%p294) target = $region32
        $region31: #{tpu_custom_call.1} parent=11 // pred_region
          _
        $region32: #{tpu_custom_call.1} parent=11 // pred_fallthru
          _
      $region12: #{tpu_custom_call.1} parent=5 // pred_fallthru
        _
      %p297 = scmp.lt.s32.totalorder %s24, 2
      // Predicated region
      $region33: #{tpu_custom_call.1} parent=5 // pred_check
        %p298 = pneg %p297
      $region34: #{tpu_custom_call.1} parent=5 // pred_check_branch
        %300 = sbr.rel (%p298) target = $region36
      $region35: #{tpu_custom_call.1} parent=5 // pred_region
        // Predicated region
        $region37: #{tpu_custom_call.1} parent=35 // pred_check
          %p301 = pneg %p58
        $region38: #{tpu_custom_call.1} parent=35 // pred_check_branch
          %303 = sbr.rel (%p301) target = $region40
        $region39: #{tpu_custom_call.1} parent=35 // pred_region
          %s304 = sand.u32 %s48, 1
          %s305 = scalar_lea.sflag [#allocation4], %s304
          %s306 = sand.u32 %s48, 1
          %s307 = smul.addr %s306, 64
          %s308 = scalar_lea.vmem [#allocation3], %s307
          %s309 = smul.u32 2, %s31
          %s310 = smul.u32 4, %s32
          %s312 = ssub.s32 1024, 1024
          %313 = vsyncadd %s305, %s312
          %s314 = smul.addr %s309, 8
          %s315 = sadd.s32 %s310, %s314
          %s316 = smul.addr %s315, 128
          %s317 = scalar_lea.hbm %s0, %s316
          %s318 = sshll.u32 %s308, 4
          %s319 = int_to_ptr.vmem [resolvable:$true] %s318
          %324 = dma.hbm_to_vmem [thread:$0]  %s317, 1024, %s319, %s305, 1024, 512, 32
        $region40: #{tpu_custom_call.1} parent=35 // pred_fallthru
          _
        // Predicated region
        $region41: #{tpu_custom_call.1} parent=35 // pred_check
          %p325 = pneg %p84
        $region42: #{tpu_custom_call.1} parent=35 // pred_check_branch
          %327 = sbr.rel (%p325) target = $region44
        $region43: #{tpu_custom_call.1} parent=35 // pred_region
          %s328 = sand.u32 %s24, 1
          %s329 = scalar_lea.sflag [#allocation7], %s328
          %s330 = sand.u32 %s74, 1
          %s331 = smul.addr %s330, 256
          %s332 = scalar_lea.vmem [#allocation6], %s331
          %s333 = smul.u32 64, %s32
          %s335 = ssub.s32 4096, 4096
          %336 = vsyncadd %s329, %s335
          %s337 = smul.addr %s333, 64
          %s338 = scalar_lea.hbm %s1, %s337
          %s339 = sshll.u32 %s332, 4
          %s340 = int_to_ptr.vmem [resolvable:$true] %s339
          %345 = dma.hbm_to_vmem [thread:$0]  %s338, 4096, %s340, %s329, 64, 64, 4
        $region44: #{tpu_custom_call.1} parent=35 // pred_fallthru
          _
      $region36: #{tpu_custom_call.1} parent=5 // pred_fallthru
        _
      %p346 = scmp.le.s32.totalorder 1, %s24
      %p347 = scmp.lt.s32.totalorder %s24, 3
      %p348 = pnand %p346, %p347
      %p349 = pneg %p348
      // Predicated region
      $region45: #{tpu_custom_call.1} parent=5 // pred_check
        _
      $region46: #{tpu_custom_call.1} parent=5 // pred_check_branch
        %351 = sbr.rel (%p348) target = $region48
      $region47: #{tpu_custom_call.1} parent=5 // pred_region
        %s352 = ssub.s32 %s24, 1
        %s353 = sand.u32 %s51, 1
        %s354 = scalar_lea.sflag [#allocation4], %s353
        %s355 = sand.u32 %s51, 1
        %s356 = smul.addr %s355, 64
        %s357 = scalar_lea.vmem [#allocation3], %s356
        // Predicated region
        $region49: #{tpu_custom_call.1} parent=47 // pred_check
          %p358 = pneg %p64
        $region50: #{tpu_custom_call.1} parent=47 // pred_check_branch
          %360 = sbr.rel (%p358) target = $region52
        $region51: #{tpu_custom_call.1} parent=47 // pred_region
          %361 = dma.done %s354, 1024
        $region52: #{tpu_custom_call.1} parent=47 // pred_fallthru
          _
        %s362 = sand.u32 %s29, 1
        %s363 = scalar_lea.sflag [#allocation7], %s362
        %s364 = sand.u32 %s77, 1
        %s365 = smul.addr %s364, 256
        %s366 = scalar_lea.vmem [#allocation6], %s365
        // Predicated region
        $region53: #{tpu_custom_call.1} parent=47 // pred_check
          %p367 = pneg %p90
        $region54: #{tpu_custom_call.1} parent=47 // pred_check_branch
          %369 = sbr.rel (%p367) target = $region56
        $region55: #{tpu_custom_call.1} parent=47 // pred_region
          %370 = dma.done %s363, 4096
        $region56: #{tpu_custom_call.1} parent=47 // pred_fallthru
          _
        // Predicated region
        $region57: #{tpu_custom_call.1} parent=47 // pred_check
          %p371 = pneg %p132
        $region58: #{tpu_custom_call.1} parent=47 // pred_check_branch
          %373 = sbr.rel (%p371) target = $region60
        $region59: #{tpu_custom_call.1} parent=47 // pred_region
          %374 = dma.done [#allocation7], 2048
        $region60: #{tpu_custom_call.1} parent=47 // pred_fallthru
          _
        // Predicated region
        $region61: #{tpu_custom_call.1} parent=47 // pred_check
          %p375 = pneg %p174
        $region62: #{tpu_custom_call.1} parent=47 // pred_check_branch
          %377 = sbr.rel (%p375) target = $region64
        $region63: #{tpu_custom_call.1} parent=47 // pred_region
          %378 = dma.done [#allocation10], 1024
        $region64: #{tpu_custom_call.1} parent=47 // pred_fallthru
          _
        %s379 = sand.u32 %s51, 1
        %s380 = scalar_lea.sflag [#allocation4], %s379
        %s381 = sand.u32 %s51, 1
        %s382 = smul.addr %s381, 64
        %s383 = scalar_lea.vmem [#allocation3], %s382
        %p384 = pneg %p64
        %p385 = pneg %p61
        %s386 = sand.u32 %s29, 1
        %s387 = scalar_lea.sflag [#allocation7], %s386
        %s388 = sand.u32 %s77, 1
        %s389 = smul.addr %s388, 256
        %s390 = scalar_lea.vmem [#allocation6], %s389
        %p391 = pneg %p90
        %p392 = pneg %p87
        %p393 = pneg %p111
        %p394 = pneg %p108
        %p395 = pneg %p132
        %p396 = pneg %p129
        %p397 = pneg %p153
        %p398 = pneg %p150
        %p399 = pneg %p174
        %p400 = pneg %p171
        %p401 = pneg %p195
        %p402 = pneg %p192
        %p403 = pneg %p221
        %p404 = pneg %p218
        %p405 = pneg %p247
        %p406 = pneg %p244
        %s407 = smul.u32 2, %s33
        %s408 = smul.u32 4, %s34
        %s409 = smul.u32 64, %s34
        %s410 = smul.u32 2, %s33
        %s411 = smul.u32 2, %s33
        %p413 = scmp.eq.s32.totalorder %s34, 0
        // Predicated region
        $region65: #{tpu_custom_call.1} parent=47 // pred_check
          %p414 = pneg %p413
        $region66: #{tpu_custom_call.1} parent=47 // pred_check_branch
          %416 = sbr.rel (%p414) target = $region68
        $region67: #{tpu_custom_call.1} parent=47 // pred_region
          %417 = vst [vmem:[#allocation2] sm:$0xff] 0.0
          %418 = vst [vmem:[#allocation2 + $0x8] sm:$0xff] 0.0
        $region68: #{tpu_custom_call.1} parent=47 // pred_fallthru
          _
        %v419 = vld [vmem:[#allocation2] sm:$0xff]
        %v420 = vld [vmem:[#allocation2 + $0x8] sm:$0xff]
        %v421 = vld [vmem:[%s357] sm:$0xff]
        %v422 = vld [vmem:[%s357 + $0x8] sm:$0xff]
        %v423 = vld [vmem:[%s357 + $0x10] sm:$0xff]
        %v424 = vld [vmem:[%s357 + $0x18] sm:$0xff]
        %v425 = vld [vmem:[%s357 + $0x20] sm:$0xff]
        %v426 = vld [vmem:[%s357 + $0x28] sm:$0xff]
        %v427 = vld [vmem:[%s357 + $0x30] sm:$0xff]
        %v428 = vld [vmem:[%s357 + $0x38] sm:$0xff]
        %v429 = vpack.c.bf16 %v425, %v421
        %v430 = vpack.c.bf16 %v426, %v422
        %v431 = vpack.c.bf16 %v427, %v423
        %v432 = vpack.c.bf16 %v428, %v424
        %v433 = vld [vmem:[%s366] sm:$0xf]
        %v434 = vld [vmem:[%s366 + $0x4] sm:$0xf]
        %v435 = vld [vmem:[%s366 + $0x8] sm:$0xf]
        %v436 = vld [vmem:[%s366 + $0xc] sm:$0xf]
        %v437 = vld [vmem:[%s366 + $0x10] sm:$0xf]
        %v438 = vld [vmem:[%s366 + $0x14] sm:$0xf]
        %v439 = vld [vmem:[%s366 + $0x18] sm:$0xf]
        %v440 = vld [vmem:[%s366 + $0x1c] sm:$0xf]
        %v441 = vld [vmem:[%s366 + $0x20] sm:$0xf]
        %v442 = vld [vmem:[%s366 + $0x24] sm:$0xf]
        %v443 = vld [vmem:[%s366 + $0x28] sm:$0xf]
        %v444 = vld [vmem:[%s366 + $0x2c] sm:$0xf]
        %v445 = vld [vmem:[%s366 + $0x30] sm:$0xf]
        %v446 = vld [vmem:[%s366 + $0x34] sm:$0xf]
        %v447 = vld [vmem:[%s366 + $0x38] sm:$0xf]
        %v448 = vld [vmem:[%s366 + $0x3c] sm:$0xf]
        %v449 = vld [vmem:[%s366 + $0x40] sm:$0xf]
        %v450 = vld [vmem:[%s366 + $0x44] sm:$0xf]
        %v451 = vld [vmem:[%s366 + $0x48] sm:$0xf]
        %v452 = vld [vmem:[%s366 + $0x4c] sm:$0xf]
        %v453 = vld [vmem:[%s366 + $0x50] sm:$0xf]
        %v454 = vld [vmem:[%s366 + $0x54] sm:$0xf]
        %v455 = vld [vmem:[%s366 + $0x58] sm:$0xf]
        %v456 = vld [vmem:[%s366 + $0x5c] sm:$0xf]
        %v457 = vld [vmem:[%s366 + $0x60] sm:$0xf]
        %v458 = vld [vmem:[%s366 + $0x64] sm:$0xf]
        %v459 = vld [vmem:[%s366 + $0x68] sm:$0xf]
        %v460 = vld [vmem:[%s366 + $0x6c] sm:$0xf]
        %v461 = vld [vmem:[%s366 + $0x70] sm:$0xf]
        %v462 = vld [vmem:[%s366 + $0x74] sm:$0xf]
        %v463 = vld [vmem:[%s366 + $0x78] sm:$0xf]
        %v464 = vld [vmem:[%s366 + $0x7c] sm:$0xf]
        %v465 = vld [vmem:[%s366 + $0x80] sm:$0xf]
        %v466 = vld [vmem:[%s366 + $0x84] sm:$0xf]
        %v467 = vld [vmem:[%s366 + $0x88] sm:$0xf]
        %v468 = vld [vmem:[%s366 + $0x8c] sm:$0xf]
        %v469 = vld [vmem:[%s366 + $0x90] sm:$0xf]
        %v470 = vld [vmem:[%s366 + $0x94] sm:$0xf]
        %v471 = vld [vmem:[%s366 + $0x98] sm:$0xf]
        %v472 = vld [vmem:[%s366 + $0x9c] sm:$0xf]
        %v473 = vld [vmem:[%s366 + $0xa0] sm:$0xf]
        %v474 = vld [vmem:[%s366 + $0xa4] sm:$0xf]
        %v475 = vld [vmem:[%s366 + $0xa8] sm:$0xf]
        %v476 = vld [vmem:[%s366 + $0xac] sm:$0xf]
        %v477 = vld [vmem:[%s366 + $0xb0] sm:$0xf]
        %v478 = vld [vmem:[%s366 + $0xb4] sm:$0xf]
        %v479 = vld [vmem:[%s366 + $0xb8] sm:$0xf]
        %v480 = vld [vmem:[%s366 + $0xbc] sm:$0xf]
        %v481 = vld [vmem:[%s366 + $0xc0] sm:$0xf]
        %v482 = vld [vmem:[%s366 + $0xc4] sm:$0xf]
        %v483 = vld [vmem:[%s366 + $0xc8] sm:$0xf]
        %v484 = vld [vmem:[%s366 + $0xcc] sm:$0xf]
        %v485 = vld [vmem:[%s366 + $0xd0] sm:$0xf]
        %v486 = vld [vmem:[%s366 + $0xd4] sm:$0xf]
        %v487 = vld [vmem:[%s366 + $0xd8] sm:$0xf]
        %v488 = vld [vmem:[%s366 + $0xdc] sm:$0xf]
        %v489 = vld [vmem:[%s366 + $0xe0] sm:$0xf]
        %v490 = vld [vmem:[%s366 + $0xe4] sm:$0xf]
        %v491 = vld [vmem:[%s366 + $0xe8] sm:$0xf]
        %v492 = vld [vmem:[%s366 + $0xec] sm:$0xf]
        %v493 = vld [vmem:[%s366 + $0xf0] sm:$0xf]
        %v494 = vld [vmem:[%s366 + $0xf4] sm:$0xf]
        %v495 = vld [vmem:[%s366 + $0xf8] sm:$0xf]
        %v496 = vld [vmem:[%s366 + $0xfc] sm:$0xf]
        %v561 = vunpack.c.l.b16 %v433
        %v562 = vunpack.c.l.b16 %v434
        %v563 = vunpack.c.l.b16 %v435
        %v564 = vunpack.c.l.b16 %v436
        %v565 = vunpack.c.l.b16 %v437
        %v566 = vunpack.c.l.b16 %v438
        %v567 = vunpack.c.l.b16 %v439
        %v568 = vunpack.c.l.b16 %v440
        %v569 = vunpack.c.l.b16 %v441
        %v570 = vunpack.c.l.b16 %v442
        %v571 = vunpack.c.l.b16 %v443
        %v572 = vunpack.c.l.b16 %v444
        %v573 = vunpack.c.l.b16 %v445
        %v574 = vunpack.c.l.b16 %v446
        %v575 = vunpack.c.l.b16 %v447
        %v576 = vunpack.c.l.b16 %v448
        %v577 = vunpack.c.l.b16 %v449
        %v578 = vunpack.c.l.b16 %v450
        %v579 = vunpack.c.l.b16 %v451
        %v580 = vunpack.c.l.b16 %v452
        %v581 = vunpack.c.l.b16 %v453
        %v582 = vunpack.c.l.b16 %v454
        %v583 = vunpack.c.l.b16 %v455
        %v584 = vunpack.c.l.b16 %v456
        %v585 = vunpack.c.l.b16 %v457
        %v586 = vunpack.c.l.b16 %v458
        %v587 = vunpack.c.l.b16 %v459
        %v588 = vunpack.c.l.b16 %v460
        %v589 = vunpack.c.l.b16 %v461
        %v590 = vunpack.c.l.b16 %v462
        %v591 = vunpack.c.l.b16 %v463
        %v592 = vunpack.c.l.b16 %v464
        %v593 = vunpack.c.l.b16 %v465
        %v594 = vunpack.c.l.b16 %v466
        %v595 = vunpack.c.l.b16 %v467
        %v596 = vunpack.c.l.b16 %v468
        %v597 = vunpack.c.l.b16 %v469
        %v598 = vunpack.c.l.b16 %v470
        %v599 = vunpack.c.l.b16 %v471
        %v600 = vunpack.c.l.b16 %v472
        %v601 = vunpack.c.l.b16 %v473
        %v602 = vunpack.c.l.b16 %v474
        %v603 = vunpack.c.l.b16 %v475
        %v604 = vunpack.c.l.b16 %v476
        %v605 = vunpack.c.l.b16 %v477
        %v606 = vunpack.c.l.b16 %v478
        %v607 = vunpack.c.l.b16 %v479
        %v608 = vunpack.c.l.b16 %v480
        %v609 = vunpack.c.l.b16 %v481
        %v610 = vunpack.c.l.b16 %v482
        %v611 = vunpack.c.l.b16 %v483
        %v612 = vunpack.c.l.b16 %v484
        %v613 = vunpack.c.l.b16 %v485
        %v614 = vunpack.c.l.b16 %v486
        %v615 = vunpack.c.l.b16 %v487
        %v616 = vunpack.c.l.b16 %v488
        %v617 = vunpack.c.l.b16 %v489
        %v618 = vunpack.c.l.b16 %v490
        %v619 = vunpack.c.l.b16 %v491
        %v620 = vunpack.c.l.b16 %v492
        %v621 = vunpack.c.l.b16 %v493
        %v622 = vunpack.c.l.b16 %v494
        %v623 = vunpack.c.l.b16 %v495
        %v624 = vunpack.c.l.b16 %v496
        %v625 = vpack.c.b16 %v562, %v561
        %v626 = vpack.c.b16 %v564, %v563
        %v627 = vpack.c.b16 %v566, %v565
        %v628 = vpack.c.b16 %v568, %v567
        %v629 = vpack.c.b16 %v570, %v569
        %v630 = vpack.c.b16 %v572, %v571
        %v631 = vpack.c.b16 %v574, %v573
        %v632 = vpack.c.b16 %v576, %v575
        %v633 = vpack.c.b16 %v578, %v577
        %v634 = vpack.c.b16 %v580, %v579
        %v635 = vpack.c.b16 %v582, %v581
        %v636 = vpack.c.b16 %v584, %v583
        %v637 = vpack.c.b16 %v586, %v585
        %v638 = vpack.c.b16 %v588, %v587
        %v639 = vpack.c.b16 %v590, %v589
        %v640 = vpack.c.b16 %v592, %v591
        %v641 = vpack.c.b16 %v594, %v593
        %v642 = vpack.c.b16 %v596, %v595
        %v643 = vpack.c.b16 %v598, %v597
        %v644 = vpack.c.b16 %v600, %v599
        %v645 = vpack.c.b16 %v602, %v601
        %v646 = vpack.c.b16 %v604, %v603
        %v647 = vpack.c.b16 %v606, %v605
        %v648 = vpack.c.b16 %v608, %v607
        %v649 = vpack.c.b16 %v610, %v609
        %v650 = vpack.c.b16 %v612, %v611
        %v651 = vpack.c.b16 %v614, %v613
        %v652 = vpack.c.b16 %v616, %v615
        %v653 = vpack.c.b16 %v618, %v617
        %v654 = vpack.c.b16 %v620, %v619
        %v655 = vpack.c.b16 %v622, %v621
        %v656 = vpack.c.b16 %v624, %v623
        %689 = vmatprep.subr.bf16.mxu0 0
        %690 = vmatpush1.bf16.msra.mxu0 %v632
        %691 = vmatprep.subr.bf16.mxu0 0
        %692 = vmatpush1.bf16.msra.mxu0 %v631
        %693 = vmatprep.subr.bf16.mxu0 0
        %694 = vmatpush1.bf16.msra.mxu0 %v630
        %695 = vmatprep.subr.bf16.mxu0 0
        %696 = vmatpush1.bf16.msra.mxu0 %v629
        %697 = vmatprep.subr.bf16.mxu0 0
        %698 = vmatpush1.bf16.msra.mxu0 %v628
        %699 = vmatprep.subr.bf16.mxu0 0
        %700 = vmatpush1.bf16.msra.mxu0 %v627
        %701 = vmatprep.subr.bf16.mxu0 0
        %702 = vmatpush1.bf16.msra.mxu0 %v626
        %703 = vmatprep.subr.bf16.mxu0 0
        %704 = vmatpush1.bf16.msra.mxu0 %v625
        %705 = vmatprep.subr.bf16.mxu0 0
        %706 = vmatpush2.bf16.msra.mxu0 %v640
        %707 = vmatprep.subr.bf16.mxu0 0
        %708 = vmatpush2.bf16.msra.mxu0 %v639
        %709 = vmatprep.subr.bf16.mxu0 0
        %710 = vmatpush2.bf16.msra.mxu0 %v638
        %711 = vmatprep.subr.bf16.mxu0 0
        %712 = vmatpush2.bf16.msra.mxu0 %v637
        %713 = vmatprep.subr.bf16.mxu0 0
        %714 = vmatpush2.bf16.msra.mxu0 %v636
        %715 = vmatprep.subr.bf16.mxu0 0
        %716 = vmatpush2.bf16.msra.mxu0 %v635
        %717 = vmatprep.subr.bf16.mxu0 0
        %718 = vmatpush2.bf16.msra.mxu0 %v634
        %719 = vmatprep.subr.bf16.mxu0 0
        %720 = vmatpush2.bf16.msra.mxu0 %v633
        %721 = vmatprep.mubr.bf16.mxu0 %v430
        %722 = vmatmul.mubr.bf16.gmra.mxu0 %v429
        %v723 = vpop.f32.mrf.mxu0
        %v724 = vadd.f32 0.0, %v723
        %v725 = vpop.f32.mrf.mxu0
        %v726 = vpop.f32.mrf.mxu0
        %v727 = vadd.f32 0.0, %v726
        %v728 = vpop.f32.mrf.mxu0
        %729 = vdwg.mxu0
        %730 = vmatprep.subr.bf16.mxu0 0
        %731 = vmatpush1.bf16.msra.mxu0 %v648
        %732 = vmatprep.subr.bf16.mxu0 0
        %733 = vmatpush1.bf16.msra.mxu0 %v647
        %734 = vmatprep.subr.bf16.mxu0 0
        %735 = vmatpush1.bf16.msra.mxu0 %v646
        %736 = vmatprep.subr.bf16.mxu0 0
        %737 = vmatpush1.bf16.msra.mxu0 %v645
        %738 = vmatprep.subr.bf16.mxu0 0
        %739 = vmatpush1.bf16.msra.mxu0 %v644
        %740 = vmatprep.subr.bf16.mxu0 0
        %741 = vmatpush1.bf16.msra.mxu0 %v643
        %742 = vmatprep.subr.bf16.mxu0 0
        %743 = vmatpush1.bf16.msra.mxu0 %v642
        %744 = vmatprep.subr.bf16.mxu0 0
        %745 = vmatpush1.bf16.msra.mxu0 %v641
        %746 = vmatprep.subr.bf16.mxu0 0
        %747 = vmatpush2.bf16.msra.mxu0 %v656
        %748 = vmatprep.subr.bf16.mxu0 0
        %749 = vmatpush2.bf16.msra.mxu0 %v655
        %750 = vmatprep.subr.bf16.mxu0 0
        %751 = vmatpush2.bf16.msra.mxu0 %v654
        %752 = vmatprep.subr.bf16.mxu0 0
        %753 = vmatpush2.bf16.msra.mxu0 %v653
        %754 = vmatprep.subr.bf16.mxu0 0
        %755 = vmatpush2.bf16.msra.mxu0 %v652
        %756 = vmatprep.subr.bf16.mxu0 0
        %757 = vmatpush2.bf16.msra.mxu0 %v651
        %758 = vmatprep.subr.bf16.mxu0 0
        %759 = vmatpush2.bf16.msra.mxu0 %v650
        %760 = vmatprep.subr.bf16.mxu0 0
        %761 = vmatpush2.bf16.msra.mxu0 %v649
        %762 = vmatprep.mubr.bf16.mxu0 %v432
        %763 = vmatmul.mubr.bf16.gmra.mxu0 %v431
        %v764 = vpop.f32.mrf.mxu0
        %v765 = vadd.f32 %v724, %v764
        %v766 = vpop.f32.mrf.mxu0
        %v767 = vpop.f32.mrf.mxu0
        %v768 = vadd.f32 %v727, %v767
        %v769 = vpop.f32.mrf.mxu0
        %770 = vdwg.mxu0
        %v771 = vadd.f32 %v419, %v765
        %v772 = vadd.f32 %v420, %v768
        %773 = vst [vmem:[#allocation2] sm:$0xff] %v771
        %774 = vst [vmem:[#allocation2 + $0x8] sm:$0xff] %v772
        %p775 = scmp.eq.s32.totalorder %s34, 1
        // Predicated region
        $region69: #{tpu_custom_call.1} parent=47 // pred_check
          %p776 = pneg %p775
        $region70: #{tpu_custom_call.1} parent=47 // pred_check_branch
          %778 = sbr.rel (%p776) target = $region72
        $region71: #{tpu_custom_call.1} parent=47 // pred_region
          %v779 = vld [vmem:[#allocation2] sm:$0xff]
          %v780 = vld [vmem:[#allocation2 + $0x8] sm:$0xff]
          %v781 = vld [vmem:[%s2] sm:$0x1]
          %v783 = vlaneseq
          %v784 = vshrl.u32 %v783, 7
          %v785 = vsub.s32 0, %v784
          %v786 = vrot.slane %v781, %v785
          %v788 = vadd.f32 %v779, %v786
          %v789 = vadd.f32 %v780, %v786
          %v790 = vmax.f32 %v788, 0.0
          %v791 = vmax.f32 %v789, 0.0
          %v792 = vpack.c.bf16 %v791, %v790
          %v793 = vld [vmem:[#allocation8] sm:$0xff]
          %v794 = vld [vmem:[#allocation8 + $0x8] sm:$0xff]
          %v795 = vld [vmem:[#allocation8 + $0x10] sm:$0xff]
          %v796 = vld [vmem:[#allocation8 + $0x18] sm:$0xff]
          %v797 = vld [vmem:[#allocation8 + $0x20] sm:$0xff]
          %v798 = vld [vmem:[#allocation8 + $0x28] sm:$0xff]
          %v799 = vld [vmem:[#allocation8 + $0x30] sm:$0xff]
          %v800 = vld [vmem:[#allocation8 + $0x38] sm:$0xff]
          %v801 = vld [vmem:[#allocation8 + $0x40] sm:$0xff]
          %v802 = vld [vmem:[#allocation8 + $0x48] sm:$0xff]
          %v803 = vld [vmem:[#allocation8 + $0x50] sm:$0xff]
          %v804 = vld [vmem:[#allocation8 + $0x58] sm:$0xff]
          %v805 = vld [vmem:[#allocation8 + $0x60] sm:$0xff]
          %v806 = vld [vmem:[#allocation8 + $0x68] sm:$0xff]
          %v807 = vld [vmem:[#allocation8 + $0x70] sm:$0xff]
          %v808 = vld [vmem:[#allocation8 + $0x78] sm:$0xff]
          %v809 = vld [vmem:[%s4] sm:$0x3]
          %v811 = vlaneseq
          %v812 = vshrl.u32 %v811, 7
          %v813 = vsub.s32 0, %v812
          %v814 = vrot.slane %v809, %v813
          %v815 = vlaneseq
          %v816 = vshrl.u32 %v815, 7
          %v817 = vsub.s32 1, %v816
          %v818 = vrot.slane %v809, %v817
          %v837 = vunpack.c.l.b16 %v793
          %v838 = vunpack.c.h.b16 %v793
          %v839 = vunpack.c.l.b16 %v794
          %v840 = vunpack.c.h.b16 %v794
          %v841 = vunpack.c.l.b16 %v795
          %v842 = vunpack.c.h.b16 %v795
          %v843 = vunpack.c.l.b16 %v796
          %v844 = vunpack.c.h.b16 %v796
          %v845 = vunpack.c.l.b16 %v797
          %v846 = vunpack.c.h.b16 %v797
          %v847 = vunpack.c.l.b16 %v798
          %v848 = vunpack.c.h.b16 %v798
          %v849 = vunpack.c.l.b16 %v799
          %v850 = vunpack.c.h.b16 %v799
          %v851 = vunpack.c.l.b16 %v800
          %v852 = vunpack.c.h.b16 %v800
          %v853 = vunpack.c.l.b16 %v801
          %v854 = vunpack.c.h.b16 %v801
          %v855 = vunpack.c.l.b16 %v802
          %v856 = vunpack.c.h.b16 %v802
          %v857 = vunpack.c.l.b16 %v803
          %v858 = vunpack.c.h.b16 %v803
          %v859 = vunpack.c.l.b16 %v804
          %v860 = vunpack.c.h.b16 %v804
          %v861 = vunpack.c.l.b16 %v805
          %v862 = vunpack.c.h.b16 %v805
          %v863 = vunpack.c.l.b16 %v806
          %v864 = vunpack.c.h.b16 %v806
          %v865 = vunpack.c.l.b16 %v807
          %v866 = vunpack.c.h.b16 %v807
          %v867 = vunpack.c.l.b16 %v808
          %v868 = vunpack.c.h.b16 %v808
          %v869 = vpack.c.b16 %v839, %v837
          %v870 = vpack.c.b16 %v840, %v838
          %v871 = vpack.c.b16 %v843, %v841
          %v872 = vpack.c.b16 %v844, %v842
          %v873 = vpack.c.b16 %v847, %v845
          %v874 = vpack.c.b16 %v848, %v846
          %v875 = vpack.c.b16 %v851, %v849
          %v876 = vpack.c.b16 %v852, %v850
          %v877 = vpack.c.b16 %v855, %v853
          %v878 = vpack.c.b16 %v856, %v854
          %v879 = vpack.c.b16 %v859, %v857
          %v880 = vpack.c.b16 %v860, %v858
          %v881 = vpack.c.b16 %v863, %v861
          %v882 = vpack.c.b16 %v864, %v862
          %v883 = vpack.c.b16 %v867, %v865
          %v884 = vpack.c.b16 %v868, %v866
          %901 = vmatprep.subr.bf16.mxu0 %v884
          %902 = vmatpush1.bf16.msra.mxu0 %v883
          %903 = vmatprep.subr.bf16.mxu0 %v882
          %904 = vmatpush1.bf16.msra.mxu0 %v881
          %905 = vmatprep.subr.bf16.mxu0 %v880
          %906 = vmatpush1.bf16.msra.mxu0 %v879
          %907 = vmatprep.subr.bf16.mxu0 %v878
          %908 = vmatpush1.bf16.msra.mxu0 %v877
          %909 = vmatprep.subr.bf16.mxu0 %v876
          %910 = vmatpush1.bf16.msra.mxu0 %v875
          %911 = vmatprep.subr.bf16.mxu0 %v874
          %912 = vmatpush1.bf16.msra.mxu0 %v873
          %913 = vmatprep.subr.bf16.mxu0 %v872
          %914 = vmatpush1.bf16.msra.mxu0 %v871
          %915 = vmatprep.subr.bf16.mxu0 %v870
          %916 = vmatpush1.bf16.msra.mxu0 %v869
          %917 = vmatprep.subr.bf16.mxu0 0
          %918 = vmatpush2.bf16.msra.mxu0 0
          %919 = vmatprep.subr.bf16.mxu0 0
          %920 = vmatpush2.bf16.msra.mxu0 0
          %921 = vmatprep.subr.bf16.mxu0 0
          %922 = vmatpush2.bf16.msra.mxu0 0
          %923 = vmatprep.subr.bf16.mxu0 0
          %924 = vmatpush2.bf16.msra.mxu0 0
          %925 = vmatprep.subr.bf16.mxu0 0
          %926 = vmatpush2.bf16.msra.mxu0 0
          %927 = vmatprep.subr.bf16.mxu0 0
          %928 = vmatpush2.bf16.msra.mxu0 0
          %929 = vmatprep.subr.bf16.mxu0 0
          %930 = vmatpush2.bf16.msra.mxu0 0
          %931 = vmatprep.subr.bf16.mxu0 0
          %932 = vmatpush2.bf16.msra.mxu0 0
          %933 = vmatprep.mubr.bf16.mxu0 0
          %934 = vmatmul.mubr.bf16.gmra.mxu0 %v792
          %v935 = vpop.f32.mrf.mxu0
          %v936 = vadd.f32 %v814, %v935
          %v937 = vpop.f32.mrf.mxu0
          %v938 = vadd.f32 %v818, %v937
          %v939 = vpop.f32.mrf.mxu0
          %v940 = vadd.f32 %v814, %v939
          %v941 = vpop.f32.mrf.mxu0
          %v942 = vadd.f32 %v818, %v941
          %943 = vdwg.mxu0
          %v944 = vmax.f32 %v938, 0.0
          %v945 = vmax.f32 %v942, 0.0
          %v946 = vpack.c.bf16 %v945, %v944
          %v947 = vld [vmem:[#allocation9] sm:$0xf]
          %v948 = vld [vmem:[#allocation9 + $0x4] sm:$0xf]
          %v949 = vld [vmem:[#allocation9 + $0x8] sm:$0xf]
          %v950 = vld [vmem:[#allocation9 + $0xc] sm:$0xf]
          %v951 = vld [vmem:[#allocation9 + $0x10] sm:$0xf]
          %v952 = vld [vmem:[#allocation9 + $0x14] sm:$0xf]
          %v953 = vld [vmem:[#allocation9 + $0x18] sm:$0xf]
          %v954 = vld [vmem:[#allocation9 + $0x1c] sm:$0xf]
          %v955 = vld [vmem:[#allocation9 + $0x20] sm:$0xf]
          %v956 = vld [vmem:[#allocation9 + $0x24] sm:$0xf]
          %v957 = vld [vmem:[#allocation9 + $0x28] sm:$0xf]
          %v958 = vld [vmem:[#allocation9 + $0x2c] sm:$0xf]
          %v959 = vld [vmem:[#allocation9 + $0x30] sm:$0xf]
          %v960 = vld [vmem:[#allocation9 + $0x34] sm:$0xf]
          %v961 = vld [vmem:[#allocation9 + $0x38] sm:$0xf]
          %v962 = vld [vmem:[#allocation9 + $0x3c] sm:$0xf]
          %v963 = vld [vmem:[%s6] sm:$0x1]
          %v965 = vlaneseq
          %v966 = vshrl.u32 %v965, 7
          %v967 = vsub.s32 0, %v966
          %v968 = vrot.slane %v963, %v967
          %v986 = vunpack.c.l.b16 %v947
          %v987 = vunpack.c.l.b16 %v948
          %v988 = vunpack.c.l.b16 %v949
          %v989 = vunpack.c.l.b16 %v950
          %v990 = vunpack.c.l.b16 %v951
          %v991 = vunpack.c.l.b16 %v952
          %v992 = vunpack.c.l.b16 %v953
          %v993 = vunpack.c.l.b16 %v954
          %v994 = vunpack.c.l.b16 %v955
          %v995 = vunpack.c.l.b16 %v956
          %v996 = vunpack.c.l.b16 %v957
          %v997 = vunpack.c.l.b16 %v958
          %v998 = vunpack.c.l.b16 %v959
          %v999 = vunpack.c.l.b16 %v960
          %v1000 = vunpack.c.l.b16 %v961
          %v1001 = vunpack.c.l.b16 %v962
          %v1002 = vpack.c.b16 %v987, %v986
          %v1003 = vpack.c.b16 %v989, %v988
          %v1004 = vpack.c.b16 %v991, %v990
          %v1005 = vpack.c.b16 %v993, %v992
          %v1006 = vpack.c.b16 %v995, %v994
          %v1007 = vpack.c.b16 %v997, %v996
          %v1008 = vpack.c.b16 %v999, %v998
          %v1009 = vpack.c.b16 %v1001, %v1000
          %1018 = vmatprep.subr.bf16.mxu0 0
          %1019 = vmatpush1.bf16.msra.mxu0 %v1009
          %1020 = vmatprep.subr.bf16.mxu0 0
          %1021 = vmatpush1.bf16.msra.mxu0 %v1008
          %1022 = vmatprep.subr.bf16.mxu0 0
          %1023 = vmatpush1.bf16.msra.mxu0 %v1007
          %1024 = vmatprep.subr.bf16.mxu0 0
          %1025 = vmatpush1.bf16.msra.mxu0 %v1006
          %1026 = vmatprep.subr.bf16.mxu0 0
          %1027 = vmatpush1.bf16.msra.mxu0 %v1005
          %1028 = vmatprep.subr.bf16.mxu0 0
          %1029 = vmatpush1.bf16.msra.mxu0 %v1004
          %1030 = vmatprep.subr.bf16.mxu0 0
          %1031 = vmatpush1.bf16.msra.mxu0 %v1003
          %1032 = vmatprep.subr.bf16.mxu0 0
          %1033 = vmatpush1.bf16.msra.mxu0 %v1002
          %1034 = vmatprep.subr.bf16.mxu0 0
          %1035 = vmatpush2.bf16.msra.mxu0 0
          %1036 = vmatprep.subr.bf16.mxu0 0
          %1037 = vmatpush2.bf16.msra.mxu0 0
          %1038 = vmatprep.subr.bf16.mxu0 0
          %1039 = vmatpush2.bf16.msra.mxu0 0
          %1040 = vmatprep.subr.bf16.mxu0 0
          %1041 = vmatpush2.bf16.msra.mxu0 0
          %1042 = vmatprep.subr.bf16.mxu0 0
          %1043 = vmatpush2.bf16.msra.mxu0 0
          %1044 = vmatprep.subr.bf16.mxu0 0
          %1045 = vmatpush2.bf16.msra.mxu0 0
          %1046 = vmatprep.subr.bf16.mxu0 0
          %1047 = vmatpush2.bf16.msra.mxu0 0
          %1048 = vmatprep.subr.bf16.mxu0 0
          %1049 = vmatpush2.bf16.msra.mxu0 0
          %1050 = vmatprep.mubr.bf16.mxu0 0
          %1051 = vmatmul.mubr.bf16.gmra.mxu0 %v946
          %v1052 = vpop.f32.mrf.mxu0
          %v1053 = vadd.f32 %v968, %v1052
          %v1054 = vpop.f32.mrf.mxu0
          %v1055 = vpop.f32.mrf.mxu0
          %v1056 = vadd.f32 %v968, %v1055
          %v1057 = vpop.f32.mrf.mxu0
          %1058 = vdwg.mxu0
          %v1059 = vmul.f32 %v1053, %v1053
          %v1060 = vmul.f32 %v1056, %v1056
          %1061 = vadd.xlane.f32.xlu0 %v1059
          %v1062 = vpop.xlane.xlu0 %1061
          %1063 = vadd.xlane.f32.xlu0 %v1060
          %v1064 = vpop.xlane.xlu0 %1063
          %v1065 = vmax.f32 %v1062, 1e-24
          %v1066 = vmax.f32 %v1064, 1e-24
          %v1067 = vrsqrt.pop %v1065
          %v1068 = vrsqrt.pop %v1066
          %v1069 = vmul.f32 %v1053, %v1067
          %v1070 = vmul.f32 %v1056, %v1068
          %v1071 = vpack.c.bf16 %v940, %v936
          %v1073 = vunpack.c.l.b16 %v1071
          %v1074 = vunpack.c.h.b16 %v1071
          %v1075 = vpack.c.b16 %v1073, %v1073
          %v1076 = vpack.c.b16 %v1074, %v1074
          %1079 = vst [vmem:[#allocation11] sm:$0xf] %v1075
          %1080 = vst [vmem:[#allocation11 + $0x4] sm:$0xf] %v1076
          %1081 = vst [vmem:[#allocation12] sm:$0xff] %v1069
          %1082 = vst [vmem:[#allocation12 + $0x8] sm:$0xff] %v1070
        $region72: #{tpu_custom_call.1} parent=47 // pred_fallthru
          _
        // Predicated region
        $region73: #{tpu_custom_call.1} parent=47 // pred_check
          %p1083 = pneg %p218
        $region74: #{tpu_custom_call.1} parent=47 // pred_check_branch
          %1085 = sbr.rel (%p1083) target = $region76
        $region75: #{tpu_custom_call.1} parent=47 // pred_region
          %s1086 = smul.u32 2, %s33
          %s1088 = ssub.s32 128, 128
          %1089 = vsyncadd [#allocation5], %s1088
          %s1090 = smul.addr %s1086, 64
          %s1091 = scalar_lea.hbm %s7, %s1090
          %s1092 = sshll.u32 [#allocation11], 4
          %s1093 = int_to_ptr.vmem [resolvable:$true] %s1092
          %1098 = dma.vmem_to_hbm [thread:$0]  %s1093, 128, %s1091, [#allocation5], 64, 64, 4
        $region76: #{tpu_custom_call.1} parent=47 // pred_fallthru
          _
        // Predicated region
        $region77: #{tpu_custom_call.1} parent=47 // pred_check
          %p1099 = pneg %p244
        $region78: #{tpu_custom_call.1} parent=47 // pred_check_branch
          %1101 = sbr.rel (%p1099) target = $region80
        $region79: #{tpu_custom_call.1} parent=47 // pred_region
          %s1102 = smul.u32 2, %s33
          %s1104 = ssub.s32 256, 256
          %1105 = vsyncadd [#allocation13], %s1104
          %s1106 = smul.addr %s1102, 128
          %s1107 = scalar_lea.hbm %s8, %s1106
          %s1108 = sshll.u32 [#allocation12], 4
          %s1109 = int_to_ptr.vmem [resolvable:$true] %s1108
          %1114 = dma.vmem_to_hbm [thread:$0]  %s1109, 256, %s1107, [#allocation13], 128, 128, 8
        $region80: #{tpu_custom_call.1} parent=47 // pred_fallthru
          _
        // Predicated region
        $region81: #{tpu_custom_call.1} parent=47 // pred_check
          %p1115 = pneg %p218
        $region82: #{tpu_custom_call.1} parent=47 // pred_check_branch
          %1117 = sbr.rel (%p1115) target = $region84
        $region83: #{tpu_custom_call.1} parent=47 // pred_region
          %1118 = dma.done [#allocation5], 128
        $region84: #{tpu_custom_call.1} parent=47 // pred_fallthru
          _
        // Predicated region
        $region85: #{tpu_custom_call.1} parent=47 // pred_check
          %p1119 = pneg %p244
        $region86: #{tpu_custom_call.1} parent=47 // pred_check_branch
          %1121 = sbr.rel (%p1119) target = $region88
        $region87: #{tpu_custom_call.1} parent=47 // pred_region
          %1122 = dma.done [#allocation13], 256
        $region88: #{tpu_custom_call.1} parent=47 // pred_fallthru
          _
      $region48: #{tpu_custom_call.1} parent=5 // pred_fallthru
        _
      %p1123 = scmp.le.s32.totalorder 2, %s24
      // Predicated region
      $region89: #{tpu_custom_call.1} parent=5 // pred_check
        %p1124 = pneg %p1123
      $region90: #{tpu_custom_call.1} parent=5 // pred_check_branch
        %1126 = sbr.rel (%p1124) target = $region92
      $region91: #{tpu_custom_call.1} parent=5 // pred_region
        %s1127 = ssub.s32 %s24, 2
      $region92: #{tpu_custom_call.1} parent=5 // pred_fallthru
        _
    $region6: #{tpu_custom_call.1} parent=1 // loop_footer
      %s28 = sadd.s32 1, %s24
    $region7: #{tpu_custom_call.1} parent=1 // loop_footer_branch
      %23 = sbr.rel target = $region3
    $region8: #{tpu_custom_call.1} parent=1 // loop_exit
      _
    %1128 = vsyncpa [#allocation4], 1
    %s1129 = scalar_lea.sflag [#allocation4], 1
    %1130 = vsyncpa %s1129, 1
    %1131 = vsyncpa [#allocation7], 1
    %s1132 = scalar_lea.sflag [#allocation7], 1
    %1133 = vsyncpa %s1132, 1
    %1134 = vsyncpa [#allocation10], 1
    %1135 = vsyncpa [#allocation5], 1
    %s1136 = scalar_lea.sflag [#allocation5], 1
    %1137 = vsyncpa %s1136, 1
    %1138 = vsyncpa [#allocation13], 1

// kernel: tpu_custom_call.1
$region0: #{tpu_custom_call.1}
  #allocation0 [shape = 'u32[]', space=smem, size = 0x4, offset = 0x4, fixed_abs, tag = 'smem constant byte address 0x4 - core index']
  #allocation1 [shape = 'u32[144,128]{1,0:T(1,128)}', space=vmem, size = 0x12000, scoped, tag = 'internal scratch']
  #allocation2 [shape = 'f32[16,128]{1,0:T(8,128)}', space=vmem, size = 0x2000, scoped, tag = 'scratch operand']
  %s0 = inlined_call_operand.hbm [shape: f32[16,1024], index: 0, kind: input, shape index: {}]
  %s1 = inlined_call_operand.hbm [shape: bf16[1024,128], index: 1, kind: input, shape index: {}]
  %s2 = inlined_call_operand.vmem [shape: f32[1,128], index: 2, kind: input, shape index: {}]
  %s3 = inlined_call_operand.hbm [shape: bf16[128,256], index: 3, kind: input, shape index: {}]
  %s4 = inlined_call_operand.vmem [shape: f32[1,256], index: 4, kind: input, shape index: {}]
  %s5 = inlined_call_operand.hbm [shape: bf16[128,128], index: 5, kind: input, shape index: {}]
  %s6 = inlined_call_operand.vmem [shape: f32[1,128], index: 6, kind: input, shape index: {}]
  %s7 = inlined_call_operand.hbm [shape: bf16[16,128], index: 7, kind: output, shape index: {0}]
  %s8 = inlined_call_operand.hbm [shape: f32[16,128], index: 8, kind: output, shape index: {1}]
  %9 = xla_tuple %s7, %s8
  %s10 = sld [smem:[#allocation0]]
  $region93: #{tpu_custom_call.1} parent=0
    _
  %s12 = ssub.s32 1, %s10
  %s13 = scalar_select 0, %s12, %s10
  $region1: #{tpu_custom_call.1} parent=0
    #allocation3 [shape = 'u8[65536]{0}', space=vmem, size = 0x10000, scoped, tag = 'input window, operand 0']
    #allocation4 [shape = 's32[2]{0}', space=sflag, size = 0x8, scoped, tag = 'scoped memory for tpu_custom_call.1']
    #allocation5 [shape = 's32[2]{0}', space=sflag, size = 0x8, scoped, tag = 'scoped memory for tpu_custom_call.1']
    #allocation6 [shape = 'u8[262144]{0}', space=vmem, size = 0x40000, scoped, tag = 'input window, operand 1']
    #allocation7 [shape = 's32[2]{0}', space=sflag, size = 0x8, scoped, tag = 'scoped memory for tpu_custom_call.1']
    #allocation8 [shape = 'u8[65536]{0}', space=vmem, size = 0x10000, scoped, tag = 'input window, operand 3, single buffered']
    #allocation9 [shape = 'u8[32768]{0}', space=vmem, size = 0x8000, scoped, tag = 'input window, operand 5, single buffered']
    #allocation10 [shape = 's32[1]{0}', space=sflag, size = 0x4, scoped, tag = 'scoped memory for tpu_custom_call.1']
    #allocation11 [shape = 'u8[4096]{0}', space=vmem, size = 0x1000, scoped, tag = 'output window, operand 0, single buffered']
    #allocation12 [shape = 'u8[8192]{0}', space=vmem, size = 0x2000, scoped, tag = 'output window, operand 1, single buffered']
    #allocation13 [shape = 's32[1]{0}', space=sflag, size = 0x4, scoped, tag = 'scoped memory for tpu_custom_call.1']
    %14 = vsyncpa [#allocation4], 0
    %s15 = scalar_lea.sflag [#allocation4], 1
    %16 = vsyncpa %s15, 0
    %17 = vsyncpa [#allocation7], 0
    %s18 = scalar_lea.sflag [#allocation7], 1
    %19 = vsyncpa %s18, 0
    %20 = vsyncpa [#allocation10], 0
    %21 = vsyncpa [#allocation5], 0
    %22 = vsyncpa [#allocation13], 0
    loop: start=0, step=1, limit=4
    $region2: #{tpu_custom_call.1} parent=1 // loop_pre_header
      _
    $region3: #{tpu_custom_call.1} parent=1 // loop_header
      %s24 = sphi 0, %s28
      %p25 = scmp.ge.s32.totalorder %s24, 4
      %s31 = sphi 0, %s43
      %s32 = sphi 0, %s39
      %s33 = sphi 0, %s31
      %s34 = sphi 0, %s32
      %s35 = sphi 0, %s33
      %s36 = sphi 0, %s34
      %s48 = sphi 0, %s50
      %s51 = sphi 0, %s48
      %s52 = sphi 0, %s51
      %s68 = sphi 0, %s52
      %s74 = sphi 0, %s76
      %s77 = sphi 0, %s74
      %s78 = sphi 0, %s77
      %s94 = sphi 0, %s78
      %s98 = sphi 0, %s98
      %s100 = sphi 0, %s98
      %s101 = sphi 0, %s100
      %s115 = sphi 0, %s101
      %s119 = sphi 0, %s119
      %s121 = sphi 0, %s119
      %s122 = sphi 0, %s121
      %s136 = sphi 0, %s122
      %s140 = sphi 0, %s140
      %s142 = sphi 0, %s140
      %s143 = sphi 0, %s142
      %s157 = sphi 0, %s143
      %s161 = sphi 0, %s161
      %s163 = sphi 0, %s161
      %s164 = sphi 0, %s163
      %s178 = sphi 0, %s164
      %s182 = sphi 0, %s182
      %s184 = sphi 0, %s182
      %s185 = sphi 0, %s184
      %s199 = sphi 0, %s185
      %s205 = sphi 0, %s207
      %s208 = sphi 0, %s205
      %s209 = sphi 0, %s208
      %s225 = sphi 0, %s209
      %s231 = sphi 0, %s233
      %s234 = sphi 0, %s231
      %s235 = sphi 0, %s234
      %s251 = sphi 0, %s235
    $region4: #{tpu_custom_call.1} parent=1 // loop_header_branch
      %27 = sbr.rel (%p25) target = $region8
    $region5: #{tpu_custom_call.1} parent=1 // loop_body
      %s29 = ssub.s32 %s24, 1
      %s30 = ssub.s32 %s24, 2
      %s37 = sadd.s32 1, %s32
      %p38 = scmp.ge.s32.totalorder %s37, 2
      %s39 = scalar_select %p38, 0, %s37
      %s40 = sadd.s32 1, %s31
      %s41 = scalar_select %p38, %s40, %s31
      %p42 = scmp.ge.s32.totalorder %s41, 1
      %s43 = scalar_select %p42, 0, %s41
      %s44 = ssub.s32 %s31, %s43
      %s45 = ssub.s32 %s32, %s39
      %s46 = sor.u32 %s44, %s45
      %p47 = scmp.eq.s32.totalorder %s46, 0
      %s49 = sadd.s32 %s48, 1
      %s50 = scalar_select %p47, %s48, %s49
      %p53 = pneg %p47
      %p54 = scmp.eq.s32.totalorder %s24, 1
      %p55 = por %p53, %p54
      %p56 = scmp.ne.s32.totalorder %s48, %s51
      %p57 = scmp.eq.s32.totalorder %s24, 0
      %p58 = por %p56, %p57
      %p59 = scmp.ne.s32.totalorder %s48, %s51
      %p60 = scmp.eq.s32.totalorder %s29, 1
      %p61 = por %p59, %p60
      %p62 = scmp.ne.s32.totalorder %s51, %s52
      %p63 = scmp.eq.s32.totalorder %s29, 0
      %p64 = por %p62, %p63
      %p65 = scmp.ne.s32.totalorder %s51, %s52
      %p66 = scmp.eq.s32.totalorder %s30, 1
      %p67 = por %p65, %p66
      %p69 = scmp.ne.s32.totalorder %s52, %s68
      %p70 = scmp.eq.s32.totalorder %s30, 0
      %p71 = por %p69, %p70
      %s72 = ssub.s32 %s32, %s39
      %p73 = scmp.eq.s32.totalorder %s72, 0
      %s75 = sadd.s32 %s74, 1
      %s76 = scalar_select %p73, %s74, %s75
      %p79 = pneg %p73
      %p80 = scmp.eq.s32.totalorder %s24, 1
      %p81 = por %p79, %p80
      %p82 = scmp.ne.s32.totalorder %s74, %s77
      %p83 = scmp.eq.s32.totalorder %s24, 0
      %p84 = por %p82, %p83
      %p85 = scmp.ne.s32.totalorder %s74, %s77
      %p86 = scmp.eq.s32.totalorder %s29, 1
      %p87 = por %p85, %p86
      %p88 = scmp.ne.s32.totalorder %s77, %s78
      %p89 = scmp.eq.s32.totalorder %s29, 0
      %p90 = por %p88, %p89
      %p91 = scmp.ne.s32.totalorder %s77, %s78
      %p92 = scmp.eq.s32.totalorder %s30, 1
      %p93 = por %p91, %p92
      %p95 = scmp.ne.s32.totalorder %s78, %s94
      %p96 = scmp.eq.s32.totalorder %s30, 0
      %p97 = por %p95, %p96
      %s99 = sadd.s32 %s98, 1
      %p102 = scmp.eq.s32.totalorder %s24, 1
      %p103 = scmp.ne.s32.totalorder %s98, %s100
      %p104 = scmp.eq.s32.totalorder %s24, 0
      %p105 = por %p103, %p104
      %p106 = scmp.ne.s32.totalorder %s98, %s100
      %p107 = scmp.eq.s32.totalorder %s29, 1
      %p108 = por %p106, %p107
      %p109 = scmp.ne.s32.totalorder %s100, %s101
      %p110 = scmp.eq.s32.totalorder %s29, 0
      %p111 = por %p109, %p110
      %p112 = scmp.ne.s32.totalorder %s100, %s101
      %p113 = scmp.eq.s32.totalorder %s30, 1
      %p114 = por %p112, %p113
      %p116 = scmp.ne.s32.totalorder %s101, %s115
      %p117 = scmp.eq.s32.totalorder %s30, 0
      %p118 = por %p116, %p117
      %s120 = sadd.s32 %s119, 1
      %p123 = scmp.eq.s32.totalorder %s24, 1
      %p124 = scmp.ne.s32.totalorder %s119, %s121
      %p125 = scmp.eq.s32.totalorder %s24, 0
      %p126 = por %p124, %p125
      %p127 = scmp.ne.s32.totalorder %s119, %s121
      %p128 = scmp.eq.s32.totalorder %s29, 1
      %p129 = por %p127, %p128
      %p130 = scmp.ne.s32.totalorder %s121, %s122
      %p131 = scmp.eq.s32.totalorder %s29, 0
      %p132 = por %p130, %p131
      %p133 = scmp.ne.s32.totalorder %s121, %s122
      %p134 = scmp.eq.s32.totalorder %s30, 1
      %p135 = por %p133, %p134
      %p137 = scmp.ne.s32.totalorder %s122, %s136
      %p138 = scmp.eq.s32.totalorder %s30, 0
      %p139 = por %p137, %p138
      %s141 = sadd.s32 %s140, 1
      %p144 = scmp.eq.s32.totalorder %s24, 1
      %p145 = scmp.ne.s32.totalorder %s140, %s142
      %p146 = scmp.eq.s32.totalorder %s24, 0
      %p147 = por %p145, %p146
      %p148 = scmp.ne.s32.totalorder %s140, %s142
      %p149 = scmp.eq.s32.totalorder %s29, 1
      %p150 = por %p148, %p149
      %p151 = scmp.ne.s32.totalorder %s142, %s143
      %p152 = scmp.eq.s32.totalorder %s29, 0
      %p153 = por %p151, %p152
      %p154 = scmp.ne.s32.totalorder %s142, %s143
      %p155 = scmp.eq.s32.totalorder %s30, 1
      %p156 = por %p154, %p155
      %p158 = scmp.ne.s32.totalorder %s143, %s157
      %p159 = scmp.eq.s32.totalorder %s30, 0
      %p160 = por %p158, %p159
      %s162 = sadd.s32 %s161, 1
      %p165 = scmp.eq.s32.totalorder %s24, 1
      %p166 = scmp.ne.s32.totalorder %s161, %s163
      %p167 = scmp.eq.s32.totalorder %s24, 0
      %p168 = por %p166, %p167
      %p169 = scmp.ne.s32.totalorder %s161, %s163
      %p170 = scmp.eq.s32.totalorder %s29, 1
      %p171 = por %p169, %p170
      %p172 = scmp.ne.s32.totalorder %s163, %s164
      %p173 = scmp.eq.s32.totalorder %s29, 0
      %p174 = por %p172, %p173
      %p175 = scmp.ne.s32.totalorder %s163, %s164
      %p176 = scmp.eq.s32.totalorder %s30, 1
      %p177 = por %p175, %p176
      %p179 = scmp.ne.s32.totalorder %s164, %s178
      %p180 = scmp.eq.s32.totalorder %s30, 0
      %p181 = por %p179, %p180
      %s183 = sadd.s32 %s182, 1
      %p186 = scmp.eq.s32.totalorder %s24, 1
      %p187 = scmp.ne.s32.totalorder %s182, %s184
      %p188 = scmp.eq.s32.totalorder %s24, 0
      %p189 = por %p187, %p188
      %p190 = scmp.ne.s32.totalorder %s182, %s184
      %p191 = scmp.eq.s32.totalorder %s29, 1
      %p192 = por %p190, %p191
      %p193 = scmp.ne.s32.totalorder %s184, %s185
      %p194 = scmp.eq.s32.totalorder %s29, 0
      %p195 = por %p193, %p194
      %p196 = scmp.ne.s32.totalorder %s184, %s185
      %p197 = scmp.eq.s32.totalorder %s30, 1
      %p198 = por %p196, %p197
      %p200 = scmp.ne.s32.totalorder %s185, %s199
      %p201 = scmp.eq.s32.totalorder %s30, 0
      %p202 = por %p200, %p201
      %s203 = ssub.s32 %s31, %s43
      %p204 = scmp.eq.s32.totalorder %s203, 0
      %s206 = sadd.s32 %s205, 1
      %s207 = scalar_select %p204, %s205, %s206
      %p210 = pneg %p204
      %p211 = scmp.eq.s32.totalorder %s24, 1
      %p212 = por %p210, %p211
      %p213 = scmp.ne.s32.totalorder %s205, %s208
      %p214 = scmp.eq.s32.totalorder %s24, 0
      %p215 = por %p213, %p214
      %p216 = scmp.ne.s32.totalorder %s205, %s208
      %p217 = scmp.eq.s32.totalorder %s29, 1
      %p218 = por %p216, %p217
      %p219 = scmp.ne.s32.totalorder %s208, %s209
      %p220 = scmp.eq.s32.totalorder %s29, 0
      %p221 = por %p219, %p220
      %p222 = scmp.ne.s32.totalorder %s208, %s209
      %p223 = scmp.eq.s32.totalorder %s30, 1
      %p224 = por %p222, %p223
      %p226 = scmp.ne.s32.totalorder %s209, %s225
      %p227 = scmp.eq.s32.totalorder %s30, 0
      %p228 = por %p226, %p227
      %s229 = ssub.s32 %s31, %s43
      %p230 = scmp.eq.s32.totalorder %s229, 0
      %s232 = sadd.s32 %s231, 1
      %s233 = scalar_select %p230, %s231, %s232
      %p236 = pneg %p230
      %p237 = scmp.eq.s32.totalorder %s24, 1
      %p238 = por %p236, %p237
      %p239 = scmp.ne.s32.totalorder %s231, %s234
      %p240 = scmp.eq.s32.totalorder %s24, 0
      %p241 = por %p239, %p240
      %p242 = scmp.ne.s32.totalorder %s231, %s234
      %p243 = scmp.eq.s32.totalorder %s29, 1
      %p244 = por %p242, %p243
      %p245 = scmp.ne.s32.totalorder %s234, %s235
      %p246 = scmp.eq.s32.totalorder %s29, 0
      %p247 = por %p245, %p246
      %p248 = scmp.ne.s32.totalorder %s234, %s235
      %p249 = scmp.eq.s32.totalorder %s30, 1
      %p250 = por %p248, %p249
      %p252 = scmp.ne.s32.totalorder %s235, %s251
      %p253 = scmp.eq.s32.totalorder %s30, 0
      %p254 = por %p252, %p253
      %p255 = scmp.le.s32.totalorder 1, %s24
      %p256 = scmp.lt.s32.totalorder %s24, 3
      %p257 = pnand %p255, %p256
      %p258 = pneg %p257
      // Predicated region
      $region9: #{tpu_custom_call.1} parent=5 // pred_check
        _
      $region10: #{tpu_custom_call.1} parent=5 // pred_check_branch
        %260 = sbr.rel (%p257) target = $region12
      $region11: #{tpu_custom_call.1} parent=5 // pred_region
        %s261 = ssub.s32 %s24, 1
        // Predicated region
        $region13: #{tpu_custom_call.1} parent=11 // pred_check
          %p262 = pneg %p111
        $region14: #{tpu_custom_call.1} parent=11 // pred_check_branch
          %264 = sbr.rel (%p262) target = $region16
        $region15: #{tpu_custom_call.1} parent=11 // pred_region
          _
        $region16: #{tpu_custom_call.1} parent=11 // pred_fallthru
          _
        // Predicated region
        $region17: #{tpu_custom_call.1} parent=11 // pred_check
          %p265 = pneg %p132
        $region18: #{tpu_custom_call.1} parent=11 // pred_check_branch
          %267 = sbr.rel (%p265) target = $region20
        $region19: #{tpu_custom_call.1} parent=11 // pred_region
          %s269 = ssub.s32 2048, 2048
          %270 = vsyncadd [#allocation7], %s269
          %s271 = sshll.u32 [#allocation8], 4
          %s272 = int_to_ptr.vmem [resolvable:$true] %s271
          %277 = dma.hbm_to_vmem [thread:$0]  %s3, 2048, %s272, [#allocation7], 128, 128, 8
        $region20: #{tpu_custom_call.1} parent=11 // pred_fallthru
          _
        // Predicated region
        $region21: #{tpu_custom_call.1} parent=11 // pred_check
          %p278 = pneg %p153
        $region22: #{tpu_custom_call.1} parent=11 // pred_check_branch
          %280 = sbr.rel (%p278) target = $region24
        $region23: #{tpu_custom_call.1} parent=11 // pred_region
          _
        $region24: #{tpu_custom_call.1} parent=11 // pred_fallthru
          _
        // Predicated region
        $region25: #{tpu_custom_call.1} parent=11 // pred_check
          %p281 = pneg %p174
        $region26: #{tpu_custom_call.1} parent=11 // pred_check_branch
          %283 = sbr.rel (%p281) target = $region28
        $region27: #{tpu_custom_call.1} parent=11 // pred_region
          %s285 = ssub.s32 1024, 1024
          %286 = vsyncadd [#allocation10], %s285
          %s287 = sshll.u32 [#allocation9], 4
          %s288 = int_to_ptr.vmem [resolvable:$true] %s287
          %293 = dma.hbm_to_vmem [thread:$0]  %s5, 1024, %s288, [#allocation10], 64, 64, 4
        $region28: #{tpu_custom_call.1} parent=11 // pred_fallthru
          _
        // Predicated region
        $region29: #{tpu_custom_call.1} parent=11 // pred_check
          %p294 = pneg %p195
        $region30: #{tpu_custom_call.1} parent=11 // pred_check_branch
          %296 = sbr.rel (%p294) target = $region32
        $region31: #{tpu_custom_call.1} parent=11 // pred_region
          _
        $region32: #{tpu_custom_call.1} parent=11 // pred_fallthru
          _
      $region12: #{tpu_custom_call.1} parent=5 // pred_fallthru
        _
      %p297 = scmp.lt.s32.totalorder %s24, 2
      // Predicated region
      $region33: #{tpu_custom_call.1} parent=5 // pred_check
        %p298 = pneg %p297
      $region34: #{tpu_custom_call.1} parent=5 // pred_check_branch
        %300 = sbr.rel (%p298) target = $region36
      $region35: #{tpu_custom_call.1} parent=5 // pred_region
        // Predicated region
        $region37: #{tpu_custom_call.1} parent=35 // pred_check
          %p301 = pneg %p58
        $region38: #{tpu_custom_call.1} parent=35 // pred_check_branch
          %303 = sbr.rel (%p301) target = $region40
        $region39: #{tpu_custom_call.1} parent=35 // pred_region
          %s304 = sand.u32 %s48, 1
          %s305 = scalar_lea.sflag [#allocation4], %s304
          %s306 = sand.u32 %s48, 1
          %s307 = smul.addr %s306, 64
          %s308 = scalar_lea.vmem [#allocation3], %s307
          %s309 = smul.u32 2, %s31
          %s310 = smul.u32 4, %s32
          %s312 = ssub.s32 1024, 1024
          %313 = vsyncadd %s305, %s312
          %s314 = smul.addr %s309, 8
          %s315 = sadd.s32 %s310, %s314
          %s316 = smul.addr %s315, 128
          %s317 = scalar_lea.hbm %s0, %s316
          %s318 = sshll.u32 %s308, 4
          %s319 = int_to_ptr.vmem [resolvable:$true] %s318
          %324 = dma.hbm_to_vmem [thread:$0]  %s317, 1024, %s319, %s305, 1024, 512, 32
        $region40: #{tpu_custom_call.1} parent=35 // pred_fallthru
          _
        // Predicated region
        $region41: #{tpu_custom_call.1} parent=35 // pred_check
          %p325 = pneg %p84
        $region42: #{tpu_custom_call.1} parent=35 // pred_check_branch
          %327 = sbr.rel (%p325) target = $region44
        $region43: #{tpu_custom_call.1} parent=35 // pred_region
          %s328 = sand.u32 %s24, 1
          %s329 = scalar_lea.sflag [#allocation7], %s328
          %s330 = sand.u32 %s74, 1
          %s331 = smul.addr %s330, 256
          %s332 = scalar_lea.vmem [#allocation6], %s331
          %s333 = smul.u32 64, %s32
          %s335 = ssub.s32 4096, 4096
          %336 = vsyncadd %s329, %s335
          %s337 = smul.addr %s333, 64
          %s338 = scalar_lea.hbm %s1, %s337
          %s339 = sshll.u32 %s332, 4
          %s340 = int_to_ptr.vmem [resolvable:$true] %s339
          %345 = dma.hbm_to_vmem [thread:$0]  %s338, 4096, %s340, %s329, 64, 64, 4
        $region44: #{tpu_custom_call.1} parent=35 // pred_fallthru
          _
      $region36: #{tpu_custom_call.1} parent=5 // pred_fallthru
        _
      %p346 = scmp.le.s32.totalorder 1, %s24
      %p347 = scmp.lt.s32.totalorder %s24, 3
      %p348 = pnand %p346, %p347
      %p349 = pneg %p348
      // Predicated region
      $region45: #{tpu_custom_call.1} parent=5 // pred_check
        _
      $region46: #{tpu_custom_call.1} parent=5 // pred_check_branch
        %351 = sbr.rel (%p348) target = $region48
      $region47: #{tpu_custom_call.1} parent=5 // pred_region
        %s352 = ssub.s32 %s24, 1
        %s353 = sand.u32 %s51, 1
        %s354 = scalar_lea.sflag [#allocation4], %s353
        %s355 = sand.u32 %s51, 1
        %s356 = smul.addr %s355, 64
        %s357 = scalar_lea.vmem [#allocation3], %s356
        // Predicated region
        $region49: #{tpu_custom_call.1} parent=47 // pred_check
          %p358 = pneg %p64
        $region50: #{tpu_custom_call.1} parent=47 // pred_check_branch
          %360 = sbr.rel (%p358) target = $region52
        $region51: #{tpu_custom_call.1} parent=47 // pred_region
          %361 = dma.done %s354, 1024
        $region52: #{tpu_custom_call.1} parent=47 // pred_fallthru
          _
        %s362 = sand.u32 %s29, 1
        %s363 = scalar_lea.sflag [#allocation7], %s362
        %s364 = sand.u32 %s77, 1
        %s365 = smul.addr %s364, 256
        %s366 = scalar_lea.vmem [#allocation6], %s365
        // Predicated region
        $region53: #{tpu_custom_call.1} parent=47 // pred_check
          %p367 = pneg %p90
        $region54: #{tpu_custom_call.1} parent=47 // pred_check_branch
          %369 = sbr.rel (%p367) target = $region56
        $region55: #{tpu_custom_call.1} parent=47 // pred_region
          %370 = dma.done %s363, 4096
        $region56: #{tpu_custom_call.1} parent=47 // pred_fallthru
          _
        // Predicated region
        $region57: #{tpu_custom_call.1} parent=47 // pred_check
          %p371 = pneg %p132
        $region58: #{tpu_custom_call.1} parent=47 // pred_check_branch
          %373 = sbr.rel (%p371) target = $region60
        $region59: #{tpu_custom_call.1} parent=47 // pred_region
          %374 = dma.done [#allocation7], 2048
        $region60: #{tpu_custom_call.1} parent=47 // pred_fallthru
          _
        // Predicated region
        $region61: #{tpu_custom_call.1} parent=47 // pred_check
          %p375 = pneg %p174
        $region62: #{tpu_custom_call.1} parent=47 // pred_check_branch
          %377 = sbr.rel (%p375) target = $region64
        $region63: #{tpu_custom_call.1} parent=47 // pred_region
          %378 = dma.done [#allocation10], 1024
        $region64: #{tpu_custom_call.1} parent=47 // pred_fallthru
          _
        %s379 = sand.u32 %s51, 1
        %s380 = scalar_lea.sflag [#allocation4], %s379
        %s381 = sand.u32 %s51, 1
        %s382 = smul.addr %s381, 64
        %s383 = scalar_lea.vmem [#allocation3], %s382
        %p384 = pneg %p64
        %p385 = pneg %p61
        %s386 = sand.u32 %s29, 1
        %s387 = scalar_lea.sflag [#allocation7], %s386
        %s388 = sand.u32 %s77, 1
        %s389 = smul.addr %s388, 256
        %s390 = scalar_lea.vmem [#allocation6], %s389
        %p391 = pneg %p90
        %p392 = pneg %p87
        %p393 = pneg %p111
        %p394 = pneg %p108
        %p395 = pneg %p132
        %p396 = pneg %p129
        %p397 = pneg %p153
        %p398 = pneg %p150
        %p399 = pneg %p174
        %p400 = pneg %p171
        %p401 = pneg %p195
        %p402 = pneg %p192
        %p403 = pneg %p221
        %p404 = pneg %p218
        %p405 = pneg %p247
        %p406 = pneg %p244
        %s407 = smul.u32 2, %s33
        %s408 = smul.u32 4, %s34
        %s409 = smul.u32 64, %s34
        %s410 = smul.u32 2, %s33
        %s411 = smul.u32 2, %s33
        %p413 = scmp.eq.s32.totalorder %s34, 0
        // Predicated region
        $region65: #{tpu_custom_call.1} parent=47 // pred_check
          %p414 = pneg %p413
        $region66: #{tpu_custom_call.1} parent=47 // pred_check_branch
          %416 = sbr.rel (%p414) target = $region68
        $region67: #{tpu_custom_call.1} parent=47 // pred_region
          %417 = vst [vmem:[#allocation2] sm:$0xff] 0.0
          %418 = vst [vmem:[#allocation2 + $0x8] sm:$0xff] 0.0
        $region68: #{tpu_custom_call.1} parent=47 // pred_fallthru
          _
        %v419 = vld [vmem:[#allocation2] sm:$0xff]
        %v420 = vld [vmem:[#allocation2 + $0x8] sm:$0xff]
        %v421 = vld [vmem:[%s357] sm:$0xff]
        %v422 = vld [vmem:[%s357 + $0x8] sm:$0xff]
        %v423 = vld [vmem:[%s357 + $0x10] sm:$0xff]
        %v424 = vld [vmem:[%s357 + $0x18] sm:$0xff]
        %v425 = vld [vmem:[%s357 + $0x20] sm:$0xff]
        %v426 = vld [vmem:[%s357 + $0x28] sm:$0xff]
        %v427 = vld [vmem:[%s357 + $0x30] sm:$0xff]
        %v428 = vld [vmem:[%s357 + $0x38] sm:$0xff]
        %v429 = vpack.c.bf16 %v425, %v421
        %v430 = vpack.c.bf16 %v426, %v422
        %v431 = vpack.c.bf16 %v427, %v423
        %v432 = vpack.c.bf16 %v428, %v424
        %v433 = vld [vmem:[%s366] sm:$0xf]
        %v434 = vld [vmem:[%s366 + $0x4] sm:$0xf]
        %v435 = vld [vmem:[%s366 + $0x8] sm:$0xf]
        %v436 = vld [vmem:[%s366 + $0xc] sm:$0xf]
        %v437 = vld [vmem:[%s366 + $0x10] sm:$0xf]
        %v438 = vld [vmem:[%s366 + $0x14] sm:$0xf]
        %v439 = vld [vmem:[%s366 + $0x18] sm:$0xf]
        %v440 = vld [vmem:[%s366 + $0x1c] sm:$0xf]
        %v441 = vld [vmem:[%s366 + $0x20] sm:$0xf]
        %v442 = vld [vmem:[%s366 + $0x24] sm:$0xf]
        %v443 = vld [vmem:[%s366 + $0x28] sm:$0xf]
        %v444 = vld [vmem:[%s366 + $0x2c] sm:$0xf]
        %v445 = vld [vmem:[%s366 + $0x30] sm:$0xf]
        %v446 = vld [vmem:[%s366 + $0x34] sm:$0xf]
        %v447 = vld [vmem:[%s366 + $0x38] sm:$0xf]
        %v448 = vld [vmem:[%s366 + $0x3c] sm:$0xf]
        %v449 = vld [vmem:[%s366 + $0x40] sm:$0xf]
        %v450 = vld [vmem:[%s366 + $0x44] sm:$0xf]
        %v451 = vld [vmem:[%s366 + $0x48] sm:$0xf]
        %v452 = vld [vmem:[%s366 + $0x4c] sm:$0xf]
        %v453 = vld [vmem:[%s366 + $0x50] sm:$0xf]
        %v454 = vld [vmem:[%s366 + $0x54] sm:$0xf]
        %v455 = vld [vmem:[%s366 + $0x58] sm:$0xf]
        %v456 = vld [vmem:[%s366 + $0x5c] sm:$0xf]
        %v457 = vld [vmem:[%s366 + $0x60] sm:$0xf]
        %v458 = vld [vmem:[%s366 + $0x64] sm:$0xf]
        %v459 = vld [vmem:[%s366 + $0x68] sm:$0xf]
        %v460 = vld [vmem:[%s366 + $0x6c] sm:$0xf]
        %v461 = vld [vmem:[%s366 + $0x70] sm:$0xf]
        %v462 = vld [vmem:[%s366 + $0x74] sm:$0xf]
        %v463 = vld [vmem:[%s366 + $0x78] sm:$0xf]
        %v464 = vld [vmem:[%s366 + $0x7c] sm:$0xf]
        %v465 = vld [vmem:[%s366 + $0x80] sm:$0xf]
        %v466 = vld [vmem:[%s366 + $0x84] sm:$0xf]
        %v467 = vld [vmem:[%s366 + $0x88] sm:$0xf]
        %v468 = vld [vmem:[%s366 + $0x8c] sm:$0xf]
        %v469 = vld [vmem:[%s366 + $0x90] sm:$0xf]
        %v470 = vld [vmem:[%s366 + $0x94] sm:$0xf]
        %v471 = vld [vmem:[%s366 + $0x98] sm:$0xf]
        %v472 = vld [vmem:[%s366 + $0x9c] sm:$0xf]
        %v473 = vld [vmem:[%s366 + $0xa0] sm:$0xf]
        %v474 = vld [vmem:[%s366 + $0xa4] sm:$0xf]
        %v475 = vld [vmem:[%s366 + $0xa8] sm:$0xf]
        %v476 = vld [vmem:[%s366 + $0xac] sm:$0xf]
        %v477 = vld [vmem:[%s366 + $0xb0] sm:$0xf]
        %v478 = vld [vmem:[%s366 + $0xb4] sm:$0xf]
        %v479 = vld [vmem:[%s366 + $0xb8] sm:$0xf]
        %v480 = vld [vmem:[%s366 + $0xbc] sm:$0xf]
        %v481 = vld [vmem:[%s366 + $0xc0] sm:$0xf]
        %v482 = vld [vmem:[%s366 + $0xc4] sm:$0xf]
        %v483 = vld [vmem:[%s366 + $0xc8] sm:$0xf]
        %v484 = vld [vmem:[%s366 + $0xcc] sm:$0xf]
        %v485 = vld [vmem:[%s366 + $0xd0] sm:$0xf]
        %v486 = vld [vmem:[%s366 + $0xd4] sm:$0xf]
        %v487 = vld [vmem:[%s366 + $0xd8] sm:$0xf]
        %v488 = vld [vmem:[%s366 + $0xdc] sm:$0xf]
        %v489 = vld [vmem:[%s366 + $0xe0] sm:$0xf]
        %v490 = vld [vmem:[%s366 + $0xe4] sm:$0xf]
        %v491 = vld [vmem:[%s366 + $0xe8] sm:$0xf]
        %v492 = vld [vmem:[%s366 + $0xec] sm:$0xf]
        %v493 = vld [vmem:[%s366 + $0xf0] sm:$0xf]
        %v494 = vld [vmem:[%s366 + $0xf4] sm:$0xf]
        %v495 = vld [vmem:[%s366 + $0xf8] sm:$0xf]
        %v496 = vld [vmem:[%s366 + $0xfc] sm:$0xf]
        %v561 = vunpack.c.l.b16 %v433
        %v562 = vunpack.c.l.b16 %v434
        %v563 = vunpack.c.l.b16 %v435
        %v564 = vunpack.c.l.b16 %v436
        %v565 = vunpack.c.l.b16 %v437
        %v566 = vunpack.c.l.b16 %v438
        %v567 = vunpack.c.l.b16 %v439
        %v568 = vunpack.c.l.b16 %v440
        %v569 = vunpack.c.l.b16 %v441
        %v570 = vunpack.c.l.b16 %v442
        %v571 = vunpack.c.l.b16 %v443
        %v572 = vunpack.c.l.b16 %v444
        %v573 = vunpack.c.l.b16 %v445
        %v574 = vunpack.c.l.b16 %v446
        %v575 = vunpack.c.l.b16 %v447
        %v576 = vunpack.c.l.b16 %v448
        %v577 = vunpack.c.l.b16 %v449
        %v578 = vunpack.c.l.b16 %v450
        %v579 = vunpack.c.l.b16 %v451
        %v580 = vunpack.c.l.b16 %v452
        %v581 = vunpack.c.l.b16 %v453
        %v582 = vunpack.c.l.b16 %v454
        %v583 = vunpack.c.l.b16 %v455
        %v584 = vunpack.c.l.b16 %v456
        %v585 = vunpack.c.l.b16 %v457
        %v586 = vunpack.c.l.b16 %v458
        %v587 = vunpack.c.l.b16 %v459
        %v588 = vunpack.c.l.b16 %v460
        %v589 = vunpack.c.l.b16 %v461
        %v590 = vunpack.c.l.b16 %v462
        %v591 = vunpack.c.l.b16 %v463
        %v592 = vunpack.c.l.b16 %v464
        %v593 = vunpack.c.l.b16 %v465
        %v594 = vunpack.c.l.b16 %v466
        %v595 = vunpack.c.l.b16 %v467
        %v596 = vunpack.c.l.b16 %v468
        %v597 = vunpack.c.l.b16 %v469
        %v598 = vunpack.c.l.b16 %v470
        %v599 = vunpack.c.l.b16 %v471
        %v600 = vunpack.c.l.b16 %v472
        %v601 = vunpack.c.l.b16 %v473
        %v602 = vunpack.c.l.b16 %v474
        %v603 = vunpack.c.l.b16 %v475
        %v604 = vunpack.c.l.b16 %v476
        %v605 = vunpack.c.l.b16 %v477
        %v606 = vunpack.c.l.b16 %v478
        %v607 = vunpack.c.l.b16 %v479
        %v608 = vunpack.c.l.b16 %v480
        %v609 = vunpack.c.l.b16 %v481
        %v610 = vunpack.c.l.b16 %v482
        %v611 = vunpack.c.l.b16 %v483
        %v612 = vunpack.c.l.b16 %v484
        %v613 = vunpack.c.l.b16 %v485
        %v614 = vunpack.c.l.b16 %v486
        %v615 = vunpack.c.l.b16 %v487
        %v616 = vunpack.c.l.b16 %v488
        %v617 = vunpack.c.l.b16 %v489
        %v618 = vunpack.c.l.b16 %v490
        %v619 = vunpack.c.l.b16 %v491
        %v620 = vunpack.c.l.b16 %v492
        %v621 = vunpack.c.l.b16 %v493
        %v622 = vunpack.c.l.b16 %v494
        %v623 = vunpack.c.l.b16 %v495
        %v624 = vunpack.c.l.b16 %v496
        %v625 = vpack.c.b16 %v562, %v561
        %v626 = vpack.c.b16 %v564, %v563
        %v627 = vpack.c.b16 %v566, %v565
        %v628 = vpack.c.b16 %v568, %v567
        %v629 = vpack.c.b16 %v570, %v569
        %v630 = vpack.c.b16 %v572, %v571
        %v631 = vpack.c.b16 %v574, %v573
        %v632 = vpack.c.b16 %v576, %v575
        %v633 = vpack.c.b16 %v578, %v577
        %v634 = vpack.c.b16 %v580, %v579
        %v635 = vpack.c.b16 %v582, %v581
        %v636 = vpack.c.b16 %v584, %v583
        %v637 = vpack.c.b16 %v586, %v585
        %v638 = vpack.c.b16 %v588, %v587
        %v639 = vpack.c.b16 %v590, %v589
        %v640 = vpack.c.b16 %v592, %v591
        %v641 = vpack.c.b16 %v594, %v593
        %v642 = vpack.c.b16 %v596, %v595
        %v643 = vpack.c.b16 %v598, %v597
        %v644 = vpack.c.b16 %v600, %v599
        %v645 = vpack.c.b16 %v602, %v601
        %v646 = vpack.c.b16 %v604, %v603
        %v647 = vpack.c.b16 %v606, %v605
        %v648 = vpack.c.b16 %v608, %v607
        %v649 = vpack.c.b16 %v610, %v609
        %v650 = vpack.c.b16 %v612, %v611
        %v651 = vpack.c.b16 %v614, %v613
        %v652 = vpack.c.b16 %v616, %v615
        %v653 = vpack.c.b16 %v618, %v617
        %v654 = vpack.c.b16 %v620, %v619
        %v655 = vpack.c.b16 %v622, %v621
        %v656 = vpack.c.b16 %v624, %v623
        %689 = vmatprep.subr.bf16.mxu0 0
        %690 = vmatpush1.bf16.msra.mxu0 %v632
        %691 = vmatprep.subr.bf16.mxu0 0
        %692 = vmatpush1.bf16.msra.mxu0 %v631
        %693 = vmatprep.subr.bf16.mxu0 0
        %694 = vmatpush1.bf16.msra.mxu0 %v630
        %695 = vmatprep.subr.bf16.mxu0 0
        %696 = vmatpush1.bf16.msra.mxu0 %v629
        %697 = vmatprep.subr.bf16.mxu0 0
        %698 = vmatpush1.bf16.msra.mxu0 %v628
        %699 = vmatprep.subr.bf16.mxu0 0
        %700 = vmatpush1.bf16.msra.mxu0 %v627
        %701 = vmatprep.subr.bf16.mxu0 0
        %702 = vmatpush1.bf16.msra.mxu0 %v626
        %703 = vmatprep.subr.bf16.mxu0 0
        %704 = vmatpush1.bf16.msra.mxu0 %v625
        %705 = vmatprep.subr.bf16.mxu0 0
        %706 = vmatpush2.bf16.msra.mxu0 %v640
        %707 = vmatprep.subr.bf16.mxu0 0
        %708 = vmatpush2.bf16.msra.mxu0 %v639
        %709 = vmatprep.subr.bf16.mxu0 0
        %710 = vmatpush2.bf16.msra.mxu0 %v638
        %711 = vmatprep.subr.bf16.mxu0 0
        %712 = vmatpush2.bf16.msra.mxu0 %v637
        %713 = vmatprep.subr.bf16.mxu0 0
        %714 = vmatpush2.bf16.msra.mxu0 %v636
        %715 = vmatprep.subr.bf16.mxu0 0
        %716 = vmatpush2.bf16.msra.mxu0 %v635
        %717 = vmatprep.subr.bf16.mxu0 0
        %718 = vmatpush2.bf16.msra.mxu0 %v634
        %719 = vmatprep.subr.bf16.mxu0 0
        %720 = vmatpush2.bf16.msra.mxu0 %v633
        %721 = vmatprep.mubr.bf16.mxu0 %v430
        %722 = vmatmul.mubr.bf16.gmra.mxu0 %v429
        %v723 = vpop.f32.mrf.mxu0
        %v724 = vadd.f32 0.0, %v723
        %v725 = vpop.f32.mrf.mxu0
        %v726 = vpop.f32.mrf.mxu0
        %v727 = vadd.f32 0.0, %v726
        %v728 = vpop.f32.mrf.mxu0
        %729 = vdwg.mxu0
        %730 = vmatprep.subr.bf16.mxu0 0
        %731 = vmatpush1.bf16.msra.mxu0 %v648
        %732 = vmatprep.subr.bf16.mxu0 0
        %733 = vmatpush1.bf16.msra.mxu0 %v647
        %734 = vmatprep.subr.bf16.mxu0 0
        %735 = vmatpush1.bf16.msra.mxu0 %v646
        %736 = vmatprep.subr.bf16.mxu0 0
        %737 = vmatpush1.bf16.msra.mxu0 %v645
        %738 = vmatprep.subr.bf16.mxu0 0
        %739 = vmatpush1.bf16.msra.mxu0 %v644
        %740 = vmatprep.subr.bf16.mxu0 0
        %741 = vmatpush1.bf16.msra.mxu0 %v643
        %742 = vmatprep.subr.bf16.mxu0 0
        %743 = vmatpush1.bf16.msra.mxu0 %v642
        %744 = vmatprep.subr.bf16.mxu0 0
        %745 = vmatpush1.bf16.msra.mxu0 %v641
        %746 = vmatprep.subr.bf16.mxu0 0
        %747 = vmatpush2.bf16.msra.mxu0 %v656
        %748 = vmatprep.subr.bf16.mxu0 0
        %749 = vmatpush2.bf16.msra.mxu0 %v655
        %750 = vmatprep.subr.bf16.mxu0 0
        %751 = vmatpush2.bf16.msra.mxu0 %v654
        %752 = vmatprep.subr.bf16.mxu0 0
        %753 = vmatpush2.bf16.msra.mxu0 %v653
        %754 = vmatprep.subr.bf16.mxu0 0
        %755 = vmatpush2.bf16.msra.mxu0 %v652
        %756 = vmatprep.subr.bf16.mxu0 0
        %757 = vmatpush2.bf16.msra.mxu0 %v651
        %758 = vmatprep.subr.bf16.mxu0 0
        %759 = vmatpush2.bf16.msra.mxu0 %v650
        %760 = vmatprep.subr.bf16.mxu0 0
        %761 = vmatpush2.bf16.msra.mxu0 %v649
        %762 = vmatprep.mubr.bf16.mxu0 %v432
        %763 = vmatmul.mubr.bf16.gmra.mxu0 %v431
        %v764 = vpop.f32.mrf.mxu0
        %v765 = vadd.f32 %v724, %v764
        %v766 = vpop.f32.mrf.mxu0
        %v767 = vpop.f32.mrf.mxu0
        %v768 = vadd.f32 %v727, %v767
        %v769 = vpop.f32.mrf.mxu0
        %770 = vdwg.mxu0
        %v771 = vadd.f32 %v419, %v765
        %v772 = vadd.f32 %v420, %v768
        %773 = vst [vmem:[#allocation2] sm:$0xff] %v771
        %774 = vst [vmem:[#allocation2 + $0x8] sm:$0xff] %v772
        %p775 = scmp.eq.s32.totalorder %s34, 1
        // Predicated region
        $region69: #{tpu_custom_call.1} parent=47 // pred_check
          %p776 = pneg %p775
        $region70: #{tpu_custom_call.1} parent=47 // pred_check_branch
          %778 = sbr.rel (%p776) target = $region72
        $region71: #{tpu_custom_call.1} parent=47 // pred_region
          %v779 = vld [vmem:[#allocation2] sm:$0xff]
          %v780 = vld [vmem:[#allocation2 + $0x8] sm:$0xff]
          %v781 = vld [vmem:[%s2] sm:$0x1]
          %v783 = vlaneseq
          %v784 = vshrl.u32 %v783, 7
          %v785 = vsub.s32 0, %v784
          %v786 = vrot.slane %v781, %v785
          %v788 = vadd.f32 %v779, %v786
          %v789 = vadd.f32 %v780, %v786
          %v790 = vmax.f32 %v788, 0.0
          %v791 = vmax.f32 %v789, 0.0
          %v792 = vpack.c.bf16 %v791, %v790
          %v793 = vld [vmem:[#allocation8] sm:$0xff]
          %v794 = vld [vmem:[#allocation8 + $0x8] sm:$0xff]
          %v795 = vld [vmem:[#allocation8 + $0x10] sm:$0xff]
          %v796 = vld [vmem:[#allocation8 + $0x18] sm:$0xff]
          %v797 = vld [vmem:[#allocation8 + $0x20] sm:$0xff]
          %v798 = vld [vmem:[#allocation8 + $0x28] sm:$0xff]
          %v799 = vld [vmem:[#allocation8 + $0x30] sm:$0xff]
          %v800 = vld [vmem:[#allocation8 + $0x38] sm:$0xff]
          %v801 = vld [vmem:[#allocation8 + $0x40] sm:$0xff]
          %v802 = vld [vmem:[#allocation8 + $0x48] sm:$0xff]
          %v803 = vld [vmem:[#allocation8 + $0x50] sm:$0xff]
          %v804 = vld [vmem:[#allocation8 + $0x58] sm:$0xff]
          %v805 = vld [vmem:[#allocation8 + $0x60] sm:$0xff]
          %v806 = vld [vmem:[#allocation8 + $0x68] sm:$0xff]
          %v807 = vld [vmem:[#allocation8 + $0x70] sm:$0xff]
          %v808 = vld [vmem:[#allocation8 + $0x78] sm:$0xff]
          %v809 = vld [vmem:[%s4] sm:$0x3]
          %v811 = vlaneseq
          %v812 = vshrl.u32 %v811, 7
          %v813 = vsub.s32 0, %v812
          %v814 = vrot.slane %v809, %v813
          %v815 = vlaneseq
          %v816 = vshrl.u32 %v815, 7
          %v817 = vsub.s32 1, %v816
          %v818 = vrot.slane %v809, %v817
          %v837 = vunpack.c.l.b16 %v793
          %v838 = vunpack.c.h.b16 %v793
          %v839 = vunpack.c.l.b16 %v794
          %v840 = vunpack.c.h.b16 %v794
          %v841 = vunpack.c.l.b16 %v795
          %v842 = vunpack.c.h.b16 %v795
          %v843 = vunpack.c.l.b16 %v796
          %v844 = vunpack.c.h.b16 %v796
          %v845 = vunpack.c.l.b16 %v797
          %v846 = vunpack.c.h.b16 %v797
          %v847 = vunpack.c.l.b16 %v798
          %v848 = vunpack.c.h.b16 %v798
          %v849 = vunpack.c.l.b16 %v799
          %v850 = vunpack.c.h.b16 %v799
          %v851 = vunpack.c.l.b16 %v800
          %v852 = vunpack.c.h.b16 %v800
          %v853 = vunpack.c.l.b16 %v801
          %v854 = vunpack.c.h.b16 %v801
          %v855 = vunpack.c.l.b16 %v802
          %v856 = vunpack.c.h.b16 %v802
          %v857 = vunpack.c.l.b16 %v803
          %v858 = vunpack.c.h.b16 %v803
          %v859 = vunpack.c.l.b16 %v804
          %v860 = vunpack.c.h.b16 %v804
          %v861 = vunpack.c.l.b16 %v805
          %v862 = vunpack.c.h.b16 %v805
          %v863 = vunpack.c.l.b16 %v806
          %v864 = vunpack.c.h.b16 %v806
          %v865 = vunpack.c.l.b16 %v807
          %v866 = vunpack.c.h.b16 %v807
          %v867 = vunpack.c.l.b16 %v808
          %v868 = vunpack.c.h.b16 %v808
          %v869 = vpack.c.b16 %v839, %v837
          %v870 = vpack.c.b16 %v840, %v838
          %v871 = vpack.c.b16 %v843, %v841
          %v872 = vpack.c.b16 %v844, %v842
          %v873 = vpack.c.b16 %v847, %v845
          %v874 = vpack.c.b16 %v848, %v846
          %v875 = vpack.c.b16 %v851, %v849
          %v876 = vpack.c.b16 %v852, %v850
          %v877 = vpack.c.b16 %v855, %v853
          %v878 = vpack.c.b16 %v856, %v854
          %v879 = vpack.c.b16 %v859, %v857
          %v880 = vpack.c.b16 %v860, %v858
          %v881 = vpack.c.b16 %v863, %v861
          %v882 = vpack.c.b16 %v864, %v862
          %v883 = vpack.c.b16 %v867, %v865
          %v884 = vpack.c.b16 %v868, %v866
          %901 = vmatprep.subr.bf16.mxu0 %v884
          %902 = vmatpush1.bf16.msra.mxu0 %v883
          %903 = vmatprep.subr.bf16.mxu0 %v882
          %904 = vmatpush1.bf16.msra.mxu0 %v881
          %905 = vmatprep.subr.bf16.mxu0 %v880
          %906 = vmatpush1.bf16.msra.mxu0 %v879
          %907 = vmatprep.subr.bf16.mxu0 %v878
          %908 = vmatpush1.bf16.msra.mxu0 %v877
          %909 = vmatprep.subr.bf16.mxu0 %v876
          %910 = vmatpush1.bf16.msra.mxu0 %v875
          %911 = vmatprep.subr.bf16.mxu0 %v874
          %912 = vmatpush1.bf16.msra.mxu0 %v873
          %913 = vmatprep.subr.bf16.mxu0 %v872
          %914 = vmatpush1.bf16.msra.mxu0 %v871
          %915 = vmatprep.subr.bf16.mxu0 %v870
          %916 = vmatpush1.bf16.msra.mxu0 %v869
          %917 = vmatprep.subr.bf16.mxu0 0
          %918 = vmatpush2.bf16.msra.mxu0 0
          %919 = vmatprep.subr.bf16.mxu0 0
          %920 = vmatpush2.bf16.msra.mxu0 0
          %921 = vmatprep.subr.bf16.mxu0 0
          %922 = vmatpush2.bf16.msra.mxu0 0
          %923 = vmatprep.subr.bf16.mxu0 0
          %924 = vmatpush2.bf16.msra.mxu0 0
          %925 = vmatprep.subr.bf16.mxu0 0
          %926 = vmatpush2.bf16.msra.mxu0 0
          %927 = vmatprep.subr.bf16.mxu0 0
          %928 = vmatpush2.bf16.msra.mxu0 0
          %929 = vmatprep.subr.bf16.mxu0 0
          %930 = vmatpush2.bf16.msra.mxu0 0
          %931 = vmatprep.subr.bf16.mxu0 0
          %932 = vmatpush2.bf16.msra.mxu0 0
          %933 = vmatprep.mubr.bf16.mxu0 0
          %934 = vmatmul.mubr.bf16.gmra.mxu0 %v792
          %v935 = vpop.f32.mrf.mxu0
          %v936 = vadd.f32 %v814, %v935
          %v937 = vpop.f32.mrf.mxu0
          %v938 = vadd.f32 %v818, %v937
          %v939 = vpop.f32.mrf.mxu0
          %v940 = vadd.f32 %v814, %v939
          %v941 = vpop.f32.mrf.mxu0
          %v942 = vadd.f32 %v818, %v941
          %943 = vdwg.mxu0
          %v944 = vmax.f32 %v938, 0.0
          %v945 = vmax.f32 %v942, 0.0
          %v946 = vpack.c.bf16 %v945, %v944
          %v947 = vld [vmem:[#allocation9] sm:$0xf]
          %v948 = vld [vmem:[#allocation9 + $0x4] sm:$0xf]
          %v949 = vld [vmem:[#allocation9 + $0x8] sm:$0xf]
          %v950 = vld [vmem:[#allocation9 + $0xc] sm:$0xf]
          %v951 = vld [vmem:[#allocation9 + $0x10] sm:$0xf]
          %v952 = vld [vmem:[#allocation9 + $0x14] sm:$0xf]
          %v953 = vld [vmem:[#allocation9 + $0x18] sm:$0xf]
          %v954 = vld [vmem:[#allocation9 + $0x1c] sm:$0xf]
          %v955 = vld [vmem:[#allocation9 + $0x20] sm:$0xf]
          %v956 = vld [vmem:[#allocation9 + $0x24] sm:$0xf]
          %v957 = vld [vmem:[#allocation9 + $0x28] sm:$0xf]
          %v958 = vld [vmem:[#allocation9 + $0x2c] sm:$0xf]
          %v959 = vld [vmem:[#allocation9 + $0x30] sm:$0xf]
          %v960 = vld [vmem:[#allocation9 + $0x34] sm:$0xf]
          %v961 = vld [vmem:[#allocation9 + $0x38] sm:$0xf]
          %v962 = vld [vmem:[#allocation9 + $0x3c] sm:$0xf]
          %v963 = vld [vmem:[%s6] sm:$0x1]
          %v965 = vlaneseq
          %v966 = vshrl.u32 %v965, 7
          %v967 = vsub.s32 0, %v966
          %v968 = vrot.slane %v963, %v967
          %v986 = vunpack.c.l.b16 %v947
          %v987 = vunpack.c.l.b16 %v948
          %v988 = vunpack.c.l.b16 %v949
          %v989 = vunpack.c.l.b16 %v950
          %v990 = vunpack.c.l.b16 %v951
          %v991 = vunpack.c.l.b16 %v952
          %v992 = vunpack.c.l.b16 %v953
          %v993 = vunpack.c.l.b16 %v954
          %v994 = vunpack.c.l.b16 %v955
          %v995 = vunpack.c.l.b16 %v956
          %v996 = vunpack.c.l.b16 %v957
          %v997 = vunpack.c.l.b16 %v958
          %v998 = vunpack.c.l.b16 %v959
          %v999 = vunpack.c.l.b16 %v960
          %v1000 = vunpack.c.l.b16 %v961
          %v1001 = vunpack.c.l.b16 %v962
          %v1002 = vpack.c.b16 %v987, %v986
          %v1003 = vpack.c.b16 %v989, %v988
          %v1004 = vpack.c.b16 %v991, %v990
          %v1005 = vpack.c.b16 %v993, %v992
          %v1006 = vpack.c.b16 %v995, %v994
          %v1007 = vpack.c.b16 %v997, %v996
          %v1008 = vpack.c.b16 %v999, %v998
          %v1009 = vpack.c.b16 %v1001, %v1000
          %1018 = vmatprep.subr.bf16.mxu0 0
          %1019 = vmatpush1.bf16.msra.mxu0 %v1009
          %1020 = vmatprep.subr.bf16.mxu0 0
          %1021 = vmatpush1.bf16.msra.mxu0 %v1008
          %1022 = vmatprep.subr.bf16.mxu0 0
          %1023 = vmatpush1.bf16.msra.mxu0 %v1007
          %1024 = vmatprep.subr.bf16.mxu0 0
          %1025 = vmatpush1.bf16.msra.mxu0 %v1006
          %1026 = vmatprep.subr.bf16.mxu0 0
          %1027 = vmatpush1.bf16.msra.mxu0 %v1005
          %1028 = vmatprep.subr.bf16.mxu0 0
          %1029 = vmatpush1.bf16.msra.mxu0 %v1004
          %1030 = vmatprep.subr.bf16.mxu0 0
          %1031 = vmatpush1.bf16.msra.mxu0 %v1003
          %1032 = vmatprep.subr.bf16.mxu0 0
          %1033 = vmatpush1.bf16.msra.mxu0 %v1002
          %1034 = vmatprep.subr.bf16.mxu0 0
          %1035 = vmatpush2.bf16.msra.mxu0 0
          %1036 = vmatprep.subr.bf16.mxu0 0
          %1037 = vmatpush2.bf16.msra.mxu0 0
          %1038 = vmatprep.subr.bf16.mxu0 0
          %1039 = vmatpush2.bf16.msra.mxu0 0
          %1040 = vmatprep.subr.bf16.mxu0 0
          %1041 = vmatpush2.bf16.msra.mxu0 0
          %1042 = vmatprep.subr.bf16.mxu0 0
          %1043 = vmatpush2.bf16.msra.mxu0 0
          %1044 = vmatprep.subr.bf16.mxu0 0
          %1045 = vmatpush2.bf16.msra.mxu0 0
          %1046 = vmatprep.subr.bf16.mxu0 0
          %1047 = vmatpush2.bf16.msra.mxu0 0
          %1048 = vmatprep.subr.bf16.mxu0 0
          %1049 = vmatpush2.bf16.msra.mxu0 0
          %1050 = vmatprep.mubr.bf16.mxu0 0
          %1051 = vmatmul.mubr.bf16.gmra.mxu0 %v946
          %v1052 = vpop.f32.mrf.mxu0
          %v1053 = vadd.f32 %v968, %v1052
          %v1054 = vpop.f32.mrf.mxu0
          %v1055 = vpop.f32.mrf.mxu0
          %v1056 = vadd.f32 %v968, %v1055
          %v1057 = vpop.f32.mrf.mxu0
          %1058 = vdwg.mxu0
          %v1059 = vmul.f32 %v1053, %v1053
          %v1060 = vmul.f32 %v1056, %v1056
          %1061 = vadd.xlane.f32.xlu0 %v1059
          %v1062 = vpop.xlane.xlu0 %1061
          %1063 = vadd.xlane.f32.xlu0 %v1060
          %v1064 = vpop.xlane.xlu0 %1063
          %v1065 = vmax.f32 %v1062, 1e-24
          %v1066 = vmax.f32 %v1064, 1e-24
          %v1067 = vrsqrt.pop %v1065
          %v1068 = vrsqrt.pop %v1066
          %v1069 = vmul.f32 %v1053, %v1067
          %v1070 = vmul.f32 %v1056, %v1068
          %v1071 = vpack.c.bf16 %v940, %v936
          %v1073 = vunpack.c.l.b16 %v1071
          %v1074 = vunpack.c.h.b16 %v1071
          %v1075 = vpack.c.b16 %v1073, %v1073
          %v1076 = vpack.c.b16 %v1074, %v1074
          %1079 = vst [vmem:[#allocation11] sm:$0xf] %v1075
          %1080 = vst [vmem:[#allocation11 + $0x4] sm:$0xf] %v1076
          %1081 = vst [vmem:[#allocation12] sm:$0xff] %v1069
          %1082 = vst [vmem:[#allocation12 + $0x8] sm:$0xff] %v1070
        $region72: #{tpu_custom_call.1} parent=47 // pred_fallthru
          _
        // Predicated region
        $region73: #{tpu_custom_call.1} parent=47 // pred_check
          %p1083 = pneg %p218
        $region74: #{tpu_custom_call.1} parent=47 // pred_check_branch
          %1085 = sbr.rel (%p1083) target = $region76
        $region75: #{tpu_custom_call.1} parent=47 // pred_region
          %s1086 = smul.u32 2, %s33
          %s1088 = ssub.s32 128, 128
          %1089 = vsyncadd [#allocation5], %s1088
          %s1090 = smul.addr %s1086, 64
          %s1091 = scalar_lea.hbm %s7, %s1090
          %s1092 = sshll.u32 [#allocation11], 4
          %s1093 = int_to_ptr.vmem [resolvable:$true] %s1092
          %1098 = dma.vmem_to_hbm [thread:$0]  %s1093, 128, %s1091, [#allocation5], 64, 64, 4
        $region76: #{tpu_custom_call.1} parent=47 // pred_fallthru
          _
        // Predicated region
        $region77: #{tpu_custom_call.1} parent=47 // pred_check
          %p1099 = pneg %p244
        $region78: #{tpu_custom_call.1} parent=47 // pred_check_branch
          %1101 = sbr.rel (%p1099) target = $region80
        $region79: #{tpu_custom_call.1} parent=47 // pred_region
          %s1102 = smul.u32 2, %s33
          %s1104 = ssub.s32 256, 256
          %1105 = vsyncadd [#allocation13], %s1104
          %s1106 = smul.addr %s1102, 128
          %s1107 = scalar_lea.hbm %s8, %s1106
          %s1108 = sshll.u32 [#allocation12], 4
          %s1109 = int_to_ptr.vmem [resolvable:$true] %s1108
          %1114 = dma.vmem_to_hbm [thread:$0]  %s1109, 256, %s1107, [#allocation13], 128, 128, 8
        $region80: #{tpu_custom_call.1} parent=47 // pred_fallthru
          _
        // Predicated region
        $region81: #{tpu_custom_call.1} parent=47 // pred_check
          %p1115 = pneg %p218
        $region82: #{tpu_custom_call.1} parent=47 // pred_check_branch
          %1117 = sbr.rel (%p1115) target = $region84
        $region83: #{tpu_custom_call.1} parent=47 // pred_region
          %1118 = dma.done [#allocation5], 128
        $region84: #{tpu_custom_call.1} parent=47 // pred_fallthru
          _
        // Predicated region
        $region85: #{tpu_custom_call.1} parent=47 // pred_check
          %p1119 = pneg %p244
        $region86: #{tpu_custom_call.1} parent=47 // pred_check_branch
          %1121 = sbr.rel (%p1119) target = $region88
        $region87: #{tpu_custom_call.1} parent=47 // pred_region
          %1122 = dma.done [#allocation13], 256
        $region88: #{tpu_custom_call.1} parent=47 // pred_fallthru
          _
      $region48: #{tpu_custom_call.1} parent=5 // pred_fallthru
        _
      %p1123 = scmp.le.s32.totalorder 2, %s24
      // Predicated region
      $region89: #{tpu_custom_call.1} parent=5 // pred_check
        %p1124 = pneg %p1123
      $region90: #{tpu_custom_call.1} parent=5 // pred_check_branch
        %1126 = sbr.rel (%p1124) target = $region92
      $region91: #{tpu_custom_call.1} parent=5 // pred_region
        %s1127 = ssub.s32 %s24, 2
      $region92: #{tpu_custom_call.1} parent=5 // pred_fallthru
        _
    $region6: #{tpu_custom_call.1} parent=1 // loop_footer
      %s28 = sadd.s32 1, %s24
    $region7: #{tpu_custom_call.1} parent=1 // loop_footer_branch
      %23 = sbr.rel target = $region3
    $region8: #{tpu_custom_call.1} parent=1 // loop_exit
      _
    %1128 = vsyncpa [#allocation4], 1
    %s1129 = scalar_lea.sflag [#allocation4], 1
    %1130 = vsyncpa %s1129, 1
    %1131 = vsyncpa [#allocation7], 1
    %s1132 = scalar_lea.sflag [#allocation7], 1
    %1133 = vsyncpa %s1132, 1
    %1134 = vsyncpa [#allocation10], 1
    %1135 = vsyncpa [#allocation5], 1
    %s1136 = scalar_lea.sflag [#allocation5], 1
    %1137 = vsyncpa %s1136, 1
    %1138 = vsyncpa [#allocation13], 1

</llo_original>
